<compile_context>
chip_gen: v7x
topology: tpu7x:2x2x1
jax: 0.10.0
libtpu: 0.0.40
codegen_flags: <defaults>
</compile_context>

<pallas_src>
import numpy as np
import jax
import jax.numpy as jnp
from jax.experimental import pallas as pl
from jax.experimental.pallas import tpu as pltpu


# ----------------------------------------------------------------------------- kernel
def symmetric_value_kernel(obs_ref, *refs):
    """obs_ref: (D, Bt) input tile, batch on the lane axis (MXU dtype, bf16).
    refs: [A0, b0, A1, b1, ..., AL, bL, out_ref] where Ai = (out_i, in_i) transposed
    doubled weights (bf16), bi = (out_i, 1) biases (bf16 hidden / f32 final),
    out_ref = (1, Bt) f32."""
    out_ref = refs[-1]
    params = refs[:-1]
    n_lin = len(params) // 2

    h = obs_ref[...]                                   # (D, Bt), MXU dtype
    mxu_dtype = h.dtype
    for i in range(n_lin):
        a = params[2 * i][...]                         # (out_i, in_i)
        b = params[2 * i + 1][...]                     # (out_i, 1), lane-broadcast
        z = jnp.dot(a, h, preferred_element_type=jnp.float32)   # f32 accumulate
        if i < n_lin - 1:
            # bias add + tanh in the bias dtype (bf16 on v6e/v7x, f32 on v5e)
            h = jnp.tanh(z.astype(b.dtype) + b).astype(mxu_dtype)
        else:
            out_ref[...] = z + b.astype(jnp.float32)   # (1, Bt), lane-dense f32 store


# ---------------------------------------------------------------------------- wrapper
def _round_up(x, m):
    return ((x + m - 1) // m) * m


def symmetric_value(obs, folded_params, *, block_b=None):
    """obs: (B, D) f32.  folded_params: output of fold_params().  Returns (B, 1) f32.

    block_b (if given) must be a multiple of 128 or equal to B."""
    B, D = obs.shape
    if block_b is None:
        if B <= 256:
            block_b = B                            # single full-extent block
        else:
            # big lane-dense tiles, but keep >=2 grid steps so both v7x TCs get work
            block_b = max(256, min(4096, _round_up(pl.cdiv(B, 2), 128)))
    nb = pl.cdiv(B, block_b)

    in_dtype = folded_params[0].dtype
    # Batch on lanes.  (B,16)->(16,B) transpose+cast is one tiny fused XLA pass; no pad:
    # Pallas masks the ragged edge block (math is lane-wise independent in batch).
    obs_t = obs.T.astype(in_dtype)                 # (D, B)

    in_specs = [pl.BlockSpec((D, block_b), lambda i: (0, i))]       # streamed input
    for p in folded_params:                                         # resident weights
        in_specs.append(pl.BlockSpec(p.shape, lambda i: (0, 0)))
    out_specs = pl.BlockSpec((1, block_b), lambda i: (0, i))        # lane-dense output

    out = pl.pallas_call(
        symmetric_value_kernel,
        out_shape=jax.ShapeDtypeStruct((1, B), jnp.float32),
        grid=(nb,),
        in_specs=in_specs,
        out_specs=out_specs,
        compiler_params=pltpu.CompilerParams(dimension_semantics=("parallel",)),
    )(obs_t, *folded_params)
    return out[0][:, None]                         # (B, 1)


# ----------------------------------------------------------------- host-side folding
def make_symmetry_matrix(c_in, n_in, s_in):
    """M such that obs @ M == cat([c, -n, r, l], -1)."""
    d = c_in + n_in + 2 * s_in
    m = np.zeros((d, d), np.float32)
    m[np.arange(0, c_in), np.arange(0, c_in)] = 1.0                       # c
    m[np.arange(c_in, c_in + n_in), np.arange(c_in, c_in + n_in)] = -1.0  # -n
    m[np.arange(c_in + n_in + s_in, c_in + n_in + 2 * s_in),
      np.arange(c_in + n_in, c_in + n_in + s_in)] = 1.0                   # r -> l slot
    m[np.arange(c_in + n_in, c_in + n_in + s_in),
      np.arange(c_in + n_in + s_in, c_in + n_in + 2 * s_in)] = 1.0        # l -> r slot
    return jnp.asarray(m)


def fold_params(params, sym_mat, mxu_dtype=jnp.bfloat16, act_dtype=jnp.bfloat16):
    """Fold symmetry + branch average into doubled, transposed weights for the kernel.

    params: [W0, b0, ..., WL, bL] with Wi (in, out) f32, bi (1, out) f32.
    Returns [A0, b0', ...] with Ai = doubled Wi, transposed to (out, in), cast to
    mxu_dtype; hidden biases as (out, 1) act_dtype columns, final bias f32."""
    n_lin = len(params) // 2
    folded = []
    for i in range(n_lin):
        w = params[2 * i]
        b = params[2 * i + 1].reshape(-1)
        if i == 0:                                        # [x @ W0 | (x @ M) @ W0]
            wd = jnp.concatenate([w, sym_mat @ w], axis=1)
            bd = jnp.concatenate([b, b])
        elif i < n_lin - 1:                               # keep branches separate
            z = jnp.zeros_like(w)
            wd = jnp.block([[w, z], [z, w]])
            bd = jnp.concatenate([b, b])
        else:                                             # 0.5 * (branchA + branchB)
            wd = jnp.concatenate([0.5 * w, 0.5 * w], axis=0)
            bd = b
        b_dtype = act_dtype if i < n_lin - 1 else jnp.float32
        folded.append(wd.T.astype(mxu_dtype))             # (out, in)
        folded.append(bd.reshape(-1, 1).astype(b_dtype))
    return folded


def _pick_act_dtype():
    """bf16 bias-add/tanh on chips with a bf16 VPU/EUP (v6e/v7x); f32 on v5e."""
    try:
        kind = jax.devices()[0].device_kind.lower()
    except Exception:
        return jnp.bfloat16
    return jnp.float32 if "v5" in kind else jnp.bfloat16


def make_params(key, d_in, hidden, num_layers):
    """MLP params matching nn.Linear init: num_layers x Linear(hidden)+Tanh, Linear->1."""
    dims = [d_in] + [hidden] * num_layers + [1]
    params = []
    for i in range(len(dims) - 1):
        key, kw, kb = jax.random.split(key, 3)
        bound = 1.0 / np.sqrt(dims[i])
        w = jax.random.uniform(kw, (dims[i], dims[i + 1]), jnp.float32, -bound, bound)
        b = jax.random.uniform(kb, (1, dims[i + 1]), jnp.float32, -bound, bound)
        params += [w, b]
    return params


# -------------------------------------------------------------------------- reference
def reference(obs, params, c_in, n_in, s_in):
    """Pure-JAX f32 replica of SymmetricValue.forward (module semantics)."""
    c = obs[:, :c_in]
    n = obs[:, c_in:c_in + n_in]
    l = obs[:, c_in + n_in:c_in + n_in + s_in]
    r = obs[:, c_in + n_in + s_in:c_in + n_in + 2 * s_in]
    sym = jnp.concatenate([c, -n, r, l], axis=-1)

    def mlp(h):
        n_lin = len(params) // 2
        for i in range(n_lin):
            h = h @ params[2 * i] + params[2 * i + 1]
            if i < n_lin - 1:
                h = jnp.tanh(h)
        return h

    return 0.5 * (mlp(obs) + mlp(sym))


if __name__ == "__main__":
    c_in, n_in, s_in = 4, 4, 4
    hidden, num_layers = 64, 3                  # module defaults
    D = c_in + n_in + 2 * s_in                  # 16
    B = 300                                     # small; ragged edge + 2 grid steps

    key = jax.random.PRNGKey(0)
    key, k_obs = jax.random.split(key)
    obs = jax.random.normal(k_obs, (B, D), jnp.float32)

    params = make_params(key, D, hidden, num_layers)
    sym_mat = make_symmetry_matrix(c_in, n_in, s_in)
    act_dtype = _pick_act_dtype()
    folded = fold_params(params, sym_mat, mxu_dtype=jnp.bfloat16, act_dtype=act_dtype)

    out = symmetric_value(obs, folded)          # default tiling: block_b=256, grid=(2,)
    out = jax.block_until_ready(out)

    ref = reference(obs, params, c_in, n_in, s_in)
    assert out.shape == (B, 1)
    # bf16 matmul operands / bf16 tanh (f32 accumulate) vs f32 ref => loose tolerance
    np.testing.assert_allclose(np.asarray(out), np.asarray(ref), rtol=4e-2, atol=4e-2)

    print("KERNEL_OK")
</pallas_src>

<mosaic_0001>
module attributes {stable_mosaic.version = 11 : i64} {
  func.func @symmetric_value_kernel(%arg0: i32, %arg1: memref<16x256xbf16, #tpu.memory_space<vmem>>, %arg2: memref<128x16xbf16, #tpu.memory_space<vmem>>, %arg3: memref<128x1xbf16, #tpu.memory_space<vmem>>, %arg4: memref<128x128xbf16, #tpu.memory_space<vmem>>, %arg5: memref<128x1xbf16, #tpu.memory_space<vmem>>, %arg6: memref<128x128xbf16, #tpu.memory_space<vmem>>, %arg7: memref<128x1xbf16, #tpu.memory_space<vmem>>, %arg8: memref<1x128xbf16, #tpu.memory_space<vmem>>, %arg9: memref<1x1xf32, #tpu.memory_space<vmem>>, %arg10: memref<1x256xf32, #tpu.memory_space<vmem>>) attributes {dimension_semantics = [#tpu.dimension_semantics<parallel>], iteration_bounds = array<i64: 2>, scalar_prefetch = 0 : i64, scratch_operands = 0 : i64, tpu.core_type = #tpu.core_type<tc>, window_params = [{transform_indices = @transform_0, window_bounds = array<i64: 16, 256>}, {pipeline_mode = #tpu.pipeline_mode<synchronous>, transform_indices = @transform_1, window_bounds = array<i64: 128, 16>}, {pipeline_mode = #tpu.pipeline_mode<synchronous>, transform_indices = @transform_2, window_bounds = array<i64: 128, 1>}, {pipeline_mode = #tpu.pipeline_mode<synchronous>, transform_indices = @transform_3, window_bounds = array<i64: 128, 128>}, {pipeline_mode = #tpu.pipeline_mode<synchronous>, transform_indices = @transform_4, window_bounds = array<i64: 128, 1>}, {pipeline_mode = #tpu.pipeline_mode<synchronous>, transform_indices = @transform_5, window_bounds = array<i64: 128, 128>}, {pipeline_mode = #tpu.pipeline_mode<synchronous>, transform_indices = @transform_6, window_bounds = array<i64: 128, 1>}, {pipeline_mode = #tpu.pipeline_mode<synchronous>, transform_indices = @transform_7, window_bounds = array<i64: 1, 128>}, {pipeline_mode = #tpu.pipeline_mode<synchronous>, transform_indices = @transform_8, window_bounds = array<i64: 1, 1>}, {transform_indices = @transform_9, window_bounds = array<i64: 1, 256>}]} {
    %c0 = arith.constant 0 : index
    %c0_0 = arith.constant 0 : index
    %0 = vector.load %arg1[%c0, %c0_0] : memref<16x256xbf16, #tpu.memory_space<vmem>>, vector<16x256xbf16>
    %c0_1 = arith.constant 0 : index
    %c0_2 = arith.constant 0 : index
    %1 = vector.load %arg2[%c0_1, %c0_2] : memref<128x16xbf16, #tpu.memory_space<vmem>>, vector<128x16xbf16>
    %c0_3 = arith.constant 0 : index
    %c0_4 = arith.constant 0 : index
    %2 = vector.load %arg3[%c0_3, %c0_4] : memref<128x1xbf16, #tpu.memory_space<vmem>>, vector<128x1xbf16>
    %cst = arith.constant dense<0.000000e+00> : vector<128x256xf32>
    %3 = tpu.matmul %1, %0, %cst {dimension_numbers = #tpu.dot_dimension_numbers<[1], [0], [0], [1], [0, 0, 1, 1], [], []>} : vector<128x16xbf16>, vector<16x256xbf16>, vector<128x256xf32> -> vector<128x256xf32>
    %4 = arith.truncf %3 : vector<128x256xf32> to vector<128x256xbf16>
    %5 = vector.broadcast %2 : vector<128x1xbf16> to vector<128x256xbf16>
    %6 = arith.addf %4, %5 : vector<128x256xbf16>
    %7 = math.tanh %6 : vector<128x256xbf16>
    %c0_5 = arith.constant 0 : index
    %c0_6 = arith.constant 0 : index
    %8 = vector.load %arg4[%c0_5, %c0_6] : memref<128x128xbf16, #tpu.memory_space<vmem>>, vector<128x128xbf16>
    %c0_7 = arith.constant 0 : index
    %c0_8 = arith.constant 0 : index
    %9 = vector.load %arg5[%c0_7, %c0_8] : memref<128x1xbf16, #tpu.memory_space<vmem>>, vector<128x1xbf16>
    %cst_9 = arith.constant dense<0.000000e+00> : vector<128x256xf32>
    %10 = tpu.matmul %8, %7, %cst_9 {dimension_numbers = #tpu.dot_dimension_numbers<[1], [0], [0], [1], [0, 0, 1, 1], [], []>} : vector<128x128xbf16>, vector<128x256xbf16>, vector<128x256xf32> -> vector<128x256xf32>
    %11 = arith.truncf %10 : vector<128x256xf32> to vector<128x256xbf16>
    %12 = vector.broadcast %9 : vector<128x1xbf16> to vector<128x256xbf16>
    %13 = arith.addf %11, %12 : vector<128x256xbf16>
    %14 = math.tanh %13 : vector<128x256xbf16>
    %c0_10 = arith.constant 0 : index
    %c0_11 = arith.constant 0 : index
    %15 = vector.load %arg6[%c0_10, %c0_11] : memref<128x128xbf16, #tpu.memory_space<vmem>>, vector<128x128xbf16>
    %c0_12 = arith.constant 0 : index
    %c0_13 = arith.constant 0 : index
    %16 = vector.load %arg7[%c0_12, %c0_13] : memref<128x1xbf16, #tpu.memory_space<vmem>>, vector<128x1xbf16>
    %cst_14 = arith.constant dense<0.000000e+00> : vector<128x256xf32>
    %17 = tpu.matmul %15, %14, %cst_14 {dimension_numbers = #tpu.dot_dimension_numbers<[1], [0], [0], [1], [0, 0, 1, 1], [], []>} : vector<128x128xbf16>, vector<128x256xbf16>, vector<128x256xf32> -> vector<128x256xf32>
    %18 = arith.truncf %17 : vector<128x256xf32> to vector<128x256xbf16>
    %19 = vector.broadcast %16 : vector<128x1xbf16> to vector<128x256xbf16>
    %20 = arith.addf %18, %19 : vector<128x256xbf16>
    %21 = math.tanh %20 : vector<128x256xbf16>
    %c0_15 = arith.constant 0 : index
    %c0_16 = arith.constant 0 : index
    %22 = vector.load %arg8[%c0_15, %c0_16] : memref<1x128xbf16, #tpu.memory_space<vmem>>, vector<1x128xbf16>
    %c0_17 = arith.constant 0 : index
    %c0_18 = arith.constant 0 : index
    %23 = vector.load %arg9[%c0_17, %c0_18] : memref<1x1xf32, #tpu.memory_space<vmem>>, vector<1x1xf32>
    %cst_19 = arith.constant dense<0.000000e+00> : vector<1x256xf32>
    %24 = tpu.matmul %22, %21, %cst_19 {dimension_numbers = #tpu.dot_dimension_numbers<[1], [0], [0], [1], [0, 0, 1, 1], [], []>} : vector<1x128xbf16>, vector<128x256xbf16>, vector<1x256xf32> -> vector<1x256xf32>
    %25 = vector.broadcast %23 : vector<1x1xf32> to vector<1x256xf32>
    %26 = arith.addf %24, %25 : vector<1x256xf32>
    %c0_20 = arith.constant 0 : index
    %c0_21 = arith.constant 0 : index
    %27 = vector.load %arg10[%c0_20, %c0_21] : memref<1x256xf32, #tpu.memory_space<vmem>>, vector<1x256xf32>
    tpu.vector_store %arg10[%c0_20, %c0_21], %26 {strides = array<i32>} : memref<1x256xf32, #tpu.memory_space<vmem>>, vector<1x256xf32>,
    return
  }
  func.func @transform_0(%arg0: i32) -> (i32, i32) {
    %c0_i32 = arith.constant 0 : i32
    %c0_i32_0 = arith.constant 0 : i32
    return %c0_i32, %arg0 : i32, i32
  }
  func.func @transform_1(%arg0: i32) -> (i32, i32) {
    %c0_i32 = arith.constant 0 : i32
    %c0_i32_0 = arith.constant 0 : i32
    %c0_i32_1 = arith.constant 0 : i32
    return %c0_i32, %c0_i32_0 : i32, i32
  }
  func.func @transform_2(%arg0: i32) -> (i32, i32) {
    %c0_i32 = arith.constant 0 : i32
    %c0_i32_0 = arith.constant 0 : i32
    %c0_i32_1 = arith.constant 0 : i32
    return %c0_i32, %c0_i32_0 : i32, i32
  }
  func.func @transform_3(%arg0: i32) -> (i32, i32) {
    %c0_i32 = arith.constant 0 : i32
    %c0_i32_0 = arith.constant 0 : i32
    %c0_i32_1 = arith.constant 0 : i32
    return %c0_i32, %c0_i32_0 : i32, i32
  }
  func.func @transform_4(%arg0: i32) -> (i32, i32) {
    %c0_i32 = arith.constant 0 : i32
    %c0_i32_0 = arith.constant 0 : i32
    %c0_i32_1 = arith.constant 0 : i32
    return %c0_i32, %c0_i32_0 : i32, i32
  }
  func.func @transform_5(%arg0: i32) -> (i32, i32) {
    %c0_i32 = arith.constant 0 : i32
    %c0_i32_0 = arith.constant 0 : i32
    %c0_i32_1 = arith.constant 0 : i32
    return %c0_i32, %c0_i32_0 : i32, i32
  }
  func.func @transform_6(%arg0: i32) -> (i32, i32) {
    %c0_i32 = arith.constant 0 : i32
    %c0_i32_0 = arith.constant 0 : i32
    %c0_i32_1 = arith.constant 0 : i32
    return %c0_i32, %c0_i32_0 : i32, i32
  }
  func.func @transform_7(%arg0: i32) -> (i32, i32) {
    %c0_i32 = arith.constant 0 : i32
    %c0_i32_0 = arith.constant 0 : i32
    %c0_i32_1 = arith.constant 0 : i32
    return %c0_i32, %c0_i32_0 : i32, i32
  }
  func.func @transform_8(%arg0: i32) -> (i32, i32) {
    %c0_i32 = arith.constant 0 : i32
    %c0_i32_0 = arith.constant 0 : i32
    %c0_i32_1 = arith.constant 0 : i32
    return %c0_i32, %c0_i32_0 : i32, i32
  }
  func.func @transform_9(%arg0: i32) -> (i32, i32) {
    %c0_i32 = arith.constant 0 : i32
    %c0_i32_0 = arith.constant 0 : i32
    return %c0_i32, %arg0 : i32, i32
  }
}

</mosaic_0001>

<llo_original>
// kernel: tpu_custom_call.1
$region0: #{tpu_custom_call.1}
  #allocation0 [shape = 'u32[]', space=smem, size = 0x4, offset = 0x4, fixed_abs, tag = 'smem constant byte address 0x4 - core index']
  #allocation1 [shape = 'u32[144,128]{1,0:T(1,128)}', space=vmem, size = 0x12000, scoped, tag = 'internal scratch']
  #allocation2 [shape = 'f32[1,1]{1,0:T(1,128)S(1)}', space=vmem, size = 0x200, scoped, tag = 'scoped memory for tpu_custom_call.1']
  %s0 = inlined_call_operand.vmem [shape: bf16[16,300], index: 0, kind: input, shape index: {}]
  %s1 = inlined_call_operand.vmem [shape: bf16[128,16], index: 1, kind: input, shape index: {}]
  %s2 = inlined_call_operand.vmem [shape: bf16[128,1], index: 2, kind: input, shape index: {}]
  %s3 = inlined_call_operand.vmem [shape: bf16[128,128], index: 3, kind: input, shape index: {}]
  %s4 = inlined_call_operand.vmem [shape: bf16[128,1], index: 4, kind: input, shape index: {}]
  %s5 = inlined_call_operand.vmem [shape: bf16[128,128], index: 5, kind: input, shape index: {}]
  %s6 = inlined_call_operand.vmem [shape: bf16[128,1], index: 6, kind: input, shape index: {}]
  %s7 = inlined_call_operand.vmem [shape: bf16[1,128], index: 7, kind: input, shape index: {}]
  %s8 = inlined_call_operand.<no memory space> [shape: f32[1,1], index: 8, kind: input, shape index: {}]
  %s9 = inlined_call_operand.hbm [shape: f32[1,300], index: 9, kind: output, shape index: {}]
  %s10 = sld [smem:[#allocation0]]
  $region135: #{tpu_custom_call.1} parent=0
    _
  %s12 = ssub.s32 1, %s10
  %s13 = scalar_select 0, %s12, %s10
  %v14 = vstv %s8
  %15 = vst [vmem:[#allocation2] sm:$0x1] %v14
  $region1: #{tpu_custom_call.1} parent=0
    #allocation3 [shape = 'u8[16384]{0}', space=vmem, size = 0x4000, scoped, tag = 'input window, operand 0']
    #allocation4 [shape = 'u8[2048]{0}', space=vmem, size = 0x800, scoped, tag = 'output window, operand 0']
    #allocation5 [shape = 's32[2]{0}', space=sflag, size = 0x8, scoped, tag = 'scoped memory for tpu_custom_call.1']
    %16 = vsyncpa [#allocation5], 0
    %s17 = scalar_lea.sflag [#allocation5], 1
    %18 = vsyncpa %s17, 0
    loop: start=0, step=1, limit=4
    $region2: #{tpu_custom_call.1} parent=1 // loop_pre_header
      _
    $region3: #{tpu_custom_call.1} parent=1 // loop_header
      %s20 = sphi 0, %s24
      %p21 = scmp.ge.s32.totalorder %s20, 4
      %s30 = sphi 0, %s32
      %s33 = sphi 0, %s30
      %s34 = sphi 0, %s33
      %s50 = sphi 0, %s34
      %s54 = sphi 0, %s54
      %s56 = sphi 0, %s54
      %s57 = sphi 0, %s56
      %s71 = sphi 0, %s57
      %s75 = sphi 0, %s75
      %s77 = sphi 0, %s75
      %s78 = sphi 0, %s77
      %s92 = sphi 0, %s78
      %s96 = sphi 0, %s96
      %s98 = sphi 0, %s96
      %s99 = sphi 0, %s98
      %s113 = sphi 0, %s99
      %s117 = sphi 0, %s117
      %s119 = sphi 0, %s117
      %s120 = sphi 0, %s119
      %s134 = sphi 0, %s120
      %s138 = sphi 0, %s138
      %s140 = sphi 0, %s138
      %s141 = sphi 0, %s140
      %s155 = sphi 0, %s141
      %s159 = sphi 0, %s159
      %s161 = sphi 0, %s159
      %s162 = sphi 0, %s161
      %s176 = sphi 0, %s162
      %s180 = sphi 0, %s180
      %s182 = sphi 0, %s180
      %s183 = sphi 0, %s182
      %s197 = sphi 0, %s183
      %s201 = sphi 0, %s201
      %s203 = sphi 0, %s201
      %s204 = sphi 0, %s203
      %s218 = sphi 0, %s204
      %s224 = sphi 0, %s226
      %s227 = sphi 0, %s224
      %s228 = sphi 0, %s227
      %s244 = sphi 0, %s228
    $region4: #{tpu_custom_call.1} parent=1 // loop_header_branch
      %23 = sbr.rel (%p21) target = $region8
    $region5: #{tpu_custom_call.1} parent=1 // loop_body
      %s25 = ssub.s32 %s20, 1
      %s26 = ssub.s32 %s20, 2
      %s27 = sadd.s32 %s20, 1
      %s28 = ssub.s32 %s20, %s27
      %p29 = scmp.eq.s32.totalorder %s28, 0
      %s31 = sadd.s32 %s30, 1
      %s32 = scalar_select %p29, %s30, %s31
      %p35 = pneg %p29
      %p36 = scmp.eq.s32.totalorder %s20, 1
      %p37 = por %p35, %p36
      %p38 = scmp.ne.s32.totalorder %s30, %s33
      %p39 = scmp.eq.s32.totalorder %s20, 0
      %p40 = por %p38, %p39
      %p41 = scmp.ne.s32.totalorder %s30, %s33
      %p42 = scmp.eq.s32.totalorder %s25, 1
      %p43 = por %p41, %p42
      %p44 = scmp.ne.s32.totalorder %s33, %s34
      %p45 = scmp.eq.s32.totalorder %s25, 0
      %p46 = por %p44, %p45
      %p47 = scmp.ne.s32.totalorder %s33, %s34
      %p48 = scmp.eq.s32.totalorder %s26, 1
      %p49 = por %p47, %p48
      %p51 = scmp.ne.s32.totalorder %s34, %s50
      %p52 = scmp.eq.s32.totalorder %s26, 0
      %p53 = por %p51, %p52
      %s55 = sadd.s32 %s54, 1
      %p58 = scmp.eq.s32.totalorder %s20, 1
      %p59 = scmp.ne.s32.totalorder %s54, %s56
      %p60 = scmp.eq.s32.totalorder %s20, 0
      %p61 = por %p59, %p60
      %p62 = scmp.ne.s32.totalorder %s54, %s56
      %p63 = scmp.eq.s32.totalorder %s25, 1
      %p64 = por %p62, %p63
      %p65 = scmp.ne.s32.totalorder %s56, %s57
      %p66 = scmp.eq.s32.totalorder %s25, 0
      %p67 = por %p65, %p66
      %p68 = scmp.ne.s32.totalorder %s56, %s57
      %p69 = scmp.eq.s32.totalorder %s26, 1
      %p70 = por %p68, %p69
      %p72 = scmp.ne.s32.totalorder %s57, %s71
      %p73 = scmp.eq.s32.totalorder %s26, 0
      %p74 = por %p72, %p73
      %s76 = sadd.s32 %s75, 1
      %p79 = scmp.eq.s32.totalorder %s20, 1
      %p80 = scmp.ne.s32.totalorder %s75, %s77
      %p81 = scmp.eq.s32.totalorder %s20, 0
      %p82 = por %p80, %p81
      %p83 = scmp.ne.s32.totalorder %s75, %s77
      %p84 = scmp.eq.s32.totalorder %s25, 1
      %p85 = por %p83, %p84
      %p86 = scmp.ne.s32.totalorder %s77, %s78
      %p87 = scmp.eq.s32.totalorder %s25, 0
      %p88 = por %p86, %p87
      %p89 = scmp.ne.s32.totalorder %s77, %s78
      %p90 = scmp.eq.s32.totalorder %s26, 1
      %p91 = por %p89, %p90
      %p93 = scmp.ne.s32.totalorder %s78, %s92
      %p94 = scmp.eq.s32.totalorder %s26, 0
      %p95 = por %p93, %p94
      %s97 = sadd.s32 %s96, 1
      %p100 = scmp.eq.s32.totalorder %s20, 1
      %p101 = scmp.ne.s32.totalorder %s96, %s98
      %p102 = scmp.eq.s32.totalorder %s20, 0
      %p103 = por %p101, %p102
      %p104 = scmp.ne.s32.totalorder %s96, %s98
      %p105 = scmp.eq.s32.totalorder %s25, 1
      %p106 = por %p104, %p105
      %p107 = scmp.ne.s32.totalorder %s98, %s99
      %p108 = scmp.eq.s32.totalorder %s25, 0
      %p109 = por %p107, %p108
      %p110 = scmp.ne.s32.totalorder %s98, %s99
      %p111 = scmp.eq.s32.totalorder %s26, 1
      %p112 = por %p110, %p111
      %p114 = scmp.ne.s32.totalorder %s99, %s113
      %p115 = scmp.eq.s32.totalorder %s26, 0
      %p116 = por %p114, %p115
      %s118 = sadd.s32 %s117, 1
      %p121 = scmp.eq.s32.totalorder %s20, 1
      %p122 = scmp.ne.s32.totalorder %s117, %s119
      %p123 = scmp.eq.s32.totalorder %s20, 0
      %p124 = por %p122, %p123
      %p125 = scmp.ne.s32.totalorder %s117, %s119
      %p126 = scmp.eq.s32.totalorder %s25, 1
      %p127 = por %p125, %p126
      %p128 = scmp.ne.s32.totalorder %s119, %s120
      %p129 = scmp.eq.s32.totalorder %s25, 0
      %p130 = por %p128, %p129
      %p131 = scmp.ne.s32.totalorder %s119, %s120
      %p132 = scmp.eq.s32.totalorder %s26, 1
      %p133 = por %p131, %p132
      %p135 = scmp.ne.s32.totalorder %s120, %s134
      %p136 = scmp.eq.s32.totalorder %s26, 0
      %p137 = por %p135, %p136
      %s139 = sadd.s32 %s138, 1
      %p142 = scmp.eq.s32.totalorder %s20, 1
      %p143 = scmp.ne.s32.totalorder %s138, %s140
      %p144 = scmp.eq.s32.totalorder %s20, 0
      %p145 = por %p143, %p144
      %p146 = scmp.ne.s32.totalorder %s138, %s140
      %p147 = scmp.eq.s32.totalorder %s25, 1
      %p148 = por %p146, %p147
      %p149 = scmp.ne.s32.totalorder %s140, %s141
      %p150 = scmp.eq.s32.totalorder %s25, 0
      %p151 = por %p149, %p150
      %p152 = scmp.ne.s32.totalorder %s140, %s141
      %p153 = scmp.eq.s32.totalorder %s26, 1
      %p154 = por %p152, %p153
      %p156 = scmp.ne.s32.totalorder %s141, %s155
      %p157 = scmp.eq.s32.totalorder %s26, 0
      %p158 = por %p156, %p157
      %s160 = sadd.s32 %s159, 1
      %p163 = scmp.eq.s32.totalorder %s20, 1
      %p164 = scmp.ne.s32.totalorder %s159, %s161
      %p165 = scmp.eq.s32.totalorder %s20, 0
      %p166 = por %p164, %p165
      %p167 = scmp.ne.s32.totalorder %s159, %s161
      %p168 = scmp.eq.s32.totalorder %s25, 1
      %p169 = por %p167, %p168
      %p170 = scmp.ne.s32.totalorder %s161, %s162
      %p171 = scmp.eq.s32.totalorder %s25, 0
      %p172 = por %p170, %p171
      %p173 = scmp.ne.s32.totalorder %s161, %s162
      %p174 = scmp.eq.s32.totalorder %s26, 1
      %p175 = por %p173, %p174
      %p177 = scmp.ne.s32.totalorder %s162, %s176
      %p178 = scmp.eq.s32.totalorder %s26, 0
      %p179 = por %p177, %p178
      %s181 = sadd.s32 %s180, 1
      %p184 = scmp.eq.s32.totalorder %s20, 1
      %p185 = scmp.ne.s32.totalorder %s180, %s182
      %p186 = scmp.eq.s32.totalorder %s20, 0
      %p187 = por %p185, %p186
      %p188 = scmp.ne.s32.totalorder %s180, %s182
      %p189 = scmp.eq.s32.totalorder %s25, 1
      %p190 = por %p188, %p189
      %p191 = scmp.ne.s32.totalorder %s182, %s183
      %p192 = scmp.eq.s32.totalorder %s25, 0
      %p193 = por %p191, %p192
      %p194 = scmp.ne.s32.totalorder %s182, %s183
      %p195 = scmp.eq.s32.totalorder %s26, 1
      %p196 = por %p194, %p195
      %p198 = scmp.ne.s32.totalorder %s183, %s197
      %p199 = scmp.eq.s32.totalorder %s26, 0
      %p200 = por %p198, %p199
      %s202 = sadd.s32 %s201, 1
      %p205 = scmp.eq.s32.totalorder %s20, 1
      %p206 = scmp.ne.s32.totalorder %s201, %s203
      %p207 = scmp.eq.s32.totalorder %s20, 0
      %p208 = por %p206, %p207
      %p209 = scmp.ne.s32.totalorder %s201, %s203
      %p210 = scmp.eq.s32.totalorder %s25, 1
      %p211 = por %p209, %p210
      %p212 = scmp.ne.s32.totalorder %s203, %s204
      %p213 = scmp.eq.s32.totalorder %s25, 0
      %p214 = por %p212, %p213
      %p215 = scmp.ne.s32.totalorder %s203, %s204
      %p216 = scmp.eq.s32.totalorder %s26, 1
      %p217 = por %p215, %p216
      %p219 = scmp.ne.s32.totalorder %s204, %s218
      %p220 = scmp.eq.s32.totalorder %s26, 0
      %p221 = por %p219, %p220
      %s222 = ssub.s32 %s20, %s27
      %p223 = scmp.eq.s32.totalorder %s222, 0
      %s225 = sadd.s32 %s224, 1
      %s226 = scalar_select %p223, %s224, %s225
      %p229 = pneg %p223
      %p230 = scmp.eq.s32.totalorder %s20, 1
      %p231 = por %p229, %p230
      %p232 = scmp.ne.s32.totalorder %s224, %s227
      %p233 = scmp.eq.s32.totalorder %s20, 0
      %p234 = por %p232, %p233
      %p235 = scmp.ne.s32.totalorder %s224, %s227
      %p236 = scmp.eq.s32.totalorder %s25, 1
      %p237 = por %p235, %p236
      %p238 = scmp.ne.s32.totalorder %s227, %s228
      %p239 = scmp.eq.s32.totalorder %s25, 0
      %p240 = por %p238, %p239
      %p241 = scmp.ne.s32.totalorder %s227, %s228
      %p242 = scmp.eq.s32.totalorder %s26, 1
      %p243 = por %p241, %p242
      %p245 = scmp.ne.s32.totalorder %s228, %s244
      %p246 = scmp.eq.s32.totalorder %s26, 0
      %p247 = por %p245, %p246
      %p248 = scmp.le.s32.totalorder 1, %s20
      %p249 = scmp.lt.s32.totalorder %s20, 3
      %p250 = pnand %p248, %p249
      %p251 = pneg %p250
      // Predicated region
      $region9: #{tpu_custom_call.1} parent=5 // pred_check
        _
      $region10: #{tpu_custom_call.1} parent=5 // pred_check_branch
        %253 = sbr.rel (%p250) target = $region12
      $region11: #{tpu_custom_call.1} parent=5 // pred_region
        %s254 = ssub.s32 %s20, 1
        // Predicated region
        $region13: #{tpu_custom_call.1} parent=11 // pred_check
          %p255 = pneg %p67
        $region14: #{tpu_custom_call.1} parent=11 // pred_check_branch
          %257 = sbr.rel (%p255) target = $region16
        $region15: #{tpu_custom_call.1} parent=11 // pred_region
          _
        $region16: #{tpu_custom_call.1} parent=11 // pred_fallthru
          _
        // Predicated region
        $region17: #{tpu_custom_call.1} parent=11 // pred_check
          %p258 = pneg %p88
        $region18: #{tpu_custom_call.1} parent=11 // pred_check_branch
          %260 = sbr.rel (%p258) target = $region20
        $region19: #{tpu_custom_call.1} parent=11 // pred_region
          _
        $region20: #{tpu_custom_call.1} parent=11 // pred_fallthru
          _
        // Predicated region
        $region21: #{tpu_custom_call.1} parent=11 // pred_check
          %p261 = pneg %p109
        $region22: #{tpu_custom_call.1} parent=11 // pred_check_branch
          %263 = sbr.rel (%p261) target = $region24
        $region23: #{tpu_custom_call.1} parent=11 // pred_region
          _
        $region24: #{tpu_custom_call.1} parent=11 // pred_fallthru
          _
        // Predicated region
        $region25: #{tpu_custom_call.1} parent=11 // pred_check
          %p264 = pneg %p130
        $region26: #{tpu_custom_call.1} parent=11 // pred_check_branch
          %266 = sbr.rel (%p264) target = $region28
        $region27: #{tpu_custom_call.1} parent=11 // pred_region
          _
        $region28: #{tpu_custom_call.1} parent=11 // pred_fallthru
          _
        // Predicated region
        $region29: #{tpu_custom_call.1} parent=11 // pred_check
          %p267 = pneg %p151
        $region30: #{tpu_custom_call.1} parent=11 // pred_check_branch
          %269 = sbr.rel (%p267) target = $region32
        $region31: #{tpu_custom_call.1} parent=11 // pred_region
          _
        $region32: #{tpu_custom_call.1} parent=11 // pred_fallthru
          _
        // Predicated region
        $region33: #{tpu_custom_call.1} parent=11 // pred_check
          %p270 = pneg %p172
        $region34: #{tpu_custom_call.1} parent=11 // pred_check_branch
          %272 = sbr.rel (%p270) target = $region36
        $region35: #{tpu_custom_call.1} parent=11 // pred_region
          _
        $region36: #{tpu_custom_call.1} parent=11 // pred_fallthru
          _
        // Predicated region
        $region37: #{tpu_custom_call.1} parent=11 // pred_check
          %p273 = pneg %p193
        $region38: #{tpu_custom_call.1} parent=11 // pred_check_branch
          %275 = sbr.rel (%p273) target = $region40
        $region39: #{tpu_custom_call.1} parent=11 // pred_region
          _
        $region40: #{tpu_custom_call.1} parent=11 // pred_fallthru
          _
        // Predicated region
        $region41: #{tpu_custom_call.1} parent=11 // pred_check
          %p276 = pneg %p214
        $region42: #{tpu_custom_call.1} parent=11 // pred_check_branch
          %278 = sbr.rel (%p276) target = $region44
        $region43: #{tpu_custom_call.1} parent=11 // pred_region
          _
        $region44: #{tpu_custom_call.1} parent=11 // pred_fallthru
          _
      $region12: #{tpu_custom_call.1} parent=5 // pred_fallthru
        _
      %p279 = scmp.lt.s32.totalorder %s20, 2
      // Predicated region
      $region45: #{tpu_custom_call.1} parent=5 // pred_check
        %p280 = pneg %p279
      $region46: #{tpu_custom_call.1} parent=5 // pred_check_branch
        %282 = sbr.rel (%p280) target = $region48
      $region47: #{tpu_custom_call.1} parent=5 // pred_region
        // Predicated region
        $region49: #{tpu_custom_call.1} parent=47 // pred_check
          %p283 = pneg %p40
        $region50: #{tpu_custom_call.1} parent=47 // pred_check_branch
          %285 = sbr.rel (%p283) target = $region52
        $region51: #{tpu_custom_call.1} parent=47 // pred_region
          %s286 = sand.u32 %s30, 1
          %s287 = sand.u32 %s30, 1
          %s288 = smul.addr %s287, 16
          %s289 = scalar_lea.vmem [#allocation3], %s288
          %s290 = smul.u32 2, %s20
          %s291 = ssub.s32 3, %s290
          %p292 = scmp.lt.s32.totalorder %s291, 2
          %s293 = scalar_select %p292, %s291, 2
          %s294 = smul.u32 128, %s293
          %p295 = scmp.ne.s32.totalorder 0, %s294
          %s296 = smul.addr %s290, 4
          %s297 = scalar_lea.vmem %s0, %s296
          %s298 = smul.u32 %s293, 4
          // Predicated region
          $region53: #{tpu_custom_call.1} parent=51 // pred_check
            %p299 = pneg %p295
          $region54: #{tpu_custom_call.1} parent=51 // pred_check_branch
            %301 = sbr.rel (%p299) target = $region56
          $region55: #{tpu_custom_call.1} parent=51 // pred_region
            %p302 = scmp.lt.u32.totalorder %s298, 8
            %p303 = pneg %p302
            // Predicated region
            $region57: #{tpu_custom_call.1} parent=55 // pred_check
              _
            $region58: #{tpu_custom_call.1} parent=55 // pred_check_branch
              %305 = sbr.rel (%p302) target = $region60
            $region59: #{tpu_custom_call.1} parent=55 // pred_region
              %s322 = sand.u32 %s298, 7
              %p323 = scmp.eq.s32.totalorder %s322, 0
              // Predicated region
              $region72: #{tpu_custom_call.1} parent=59 // pred_check
                %p324 = pneg %p323
              $region73: #{tpu_custom_call.1} parent=59 // pred_check_branch
                %326 = sbr.rel (%p324) target = $region75
              $region74: #{tpu_custom_call.1} parent=59 // pred_region
                %s327 = sshrl.u32 %s298, 3
                %s328 = sshrl.u32 %s327, 5
                // While loop
                $region76: #{tpu_custom_call.1} parent=74 // loop_pre_header
                  _
                $region77: #{tpu_custom_call.1} parent=74 // loop_header
                  %s332 = sphi 0, %s334
                  %p333 = scmp.ge.s32.totalorder %s332, %s328
                  %s337 = sphi 0, %s470
                  %s338 = sphi %s297, %s473
                  %s339 = sphi %s289, %s474
                $region78: #{tpu_custom_call.1} parent=74 // loop_header_branch
                  %336 = sbr.rel (%p333) target = $region82
                $region79: #{tpu_custom_call.1} parent=74 // loop_body
                  %v340 = vld [vmem:[%s338] sm:$0xff]
                  %341 = vst [vmem:[%s339] sm:$0xff] %v340
                  %v342 = vld [vmem:[%s338 + $0x8] sm:$0xff]
                  %343 = vst [vmem:[%s339 + $0x8] sm:$0xff] %v342
                  %v344 = vld [vmem:[%s338 + $0x10] sm:$0xff]
                  %345 = vst [vmem:[%s339 + $0x10] sm:$0xff] %v344
                  %v346 = vld [vmem:[%s338 + $0x18] sm:$0xff]
                  %347 = vst [vmem:[%s339 + $0x18] sm:$0xff] %v346
                  %v348 = vld [vmem:[%s338 + $0x20] sm:$0xff]
                  %349 = vst [vmem:[%s339 + $0x20] sm:$0xff] %v348
                  %v350 = vld [vmem:[%s338 + $0x28] sm:$0xff]
                  %351 = vst [vmem:[%s339 + $0x28] sm:$0xff] %v350
                  %v352 = vld [vmem:[%s338 + $0x30] sm:$0xff]
                  %353 = vst [vmem:[%s339 + $0x30] sm:$0xff] %v352
                  %v354 = vld [vmem:[%s338 + $0x38] sm:$0xff]
                  %355 = vst [vmem:[%s339 + $0x38] sm:$0xff] %v354
                  %v356 = vld [vmem:[%s338 + $0x40] sm:$0xff]
                  %357 = vst [vmem:[%s339 + $0x40] sm:$0xff] %v356
                  %v358 = vld [vmem:[%s338 + $0x48] sm:$0xff]
                  %359 = vst [vmem:[%s339 + $0x48] sm:$0xff] %v358
                  %v360 = vld [vmem:[%s338 + $0x50] sm:$0xff]
                  %361 = vst [vmem:[%s339 + $0x50] sm:$0xff] %v360
                  %v362 = vld [vmem:[%s338 + $0x58] sm:$0xff]
                  %363 = vst [vmem:[%s339 + $0x58] sm:$0xff] %v362
                  %v364 = vld [vmem:[%s338 + $0x60] sm:$0xff]
                  %365 = vst [vmem:[%s339 + $0x60] sm:$0xff] %v364
                  %v366 = vld [vmem:[%s338 + $0x68] sm:$0xff]
                  %367 = vst [vmem:[%s339 + $0x68] sm:$0xff] %v366
                  %v368 = vld [vmem:[%s338 + $0x70] sm:$0xff]
                  %369 = vst [vmem:[%s339 + $0x70] sm:$0xff] %v368
                  %v370 = vld [vmem:[%s338 + $0x78] sm:$0xff]
                  %371 = vst [vmem:[%s339 + $0x78] sm:$0xff] %v370
                  %v372 = vld [vmem:[%s338 + $0x80] sm:$0xff]
                  %373 = vst [vmem:[%s339 + $0x80] sm:$0xff] %v372
                  %v374 = vld [vmem:[%s338 + $0x88] sm:$0xff]
                  %375 = vst [vmem:[%s339 + $0x88] sm:$0xff] %v374
                  %v376 = vld [vmem:[%s338 + $0x90] sm:$0xff]
                  %377 = vst [vmem:[%s339 + $0x90] sm:$0xff] %v376
                  %v378 = vld [vmem:[%s338 + $0x98] sm:$0xff]
                  %379 = vst [vmem:[%s339 + $0x98] sm:$0xff] %v378
                  %v380 = vld [vmem:[%s338 + $0xa0] sm:$0xff]
                  %381 = vst [vmem:[%s339 + $0xa0] sm:$0xff] %v380
                  %v382 = vld [vmem:[%s338 + $0xa8] sm:$0xff]
                  %383 = vst [vmem:[%s339 + $0xa8] sm:$0xff] %v382
                  %v384 = vld [vmem:[%s338 + $0xb0] sm:$0xff]
                  %385 = vst [vmem:[%s339 + $0xb0] sm:$0xff] %v384
                  %v386 = vld [vmem:[%s338 + $0xb8] sm:$0xff]
                  %387 = vst [vmem:[%s339 + $0xb8] sm:$0xff] %v386
                  %v388 = vld [vmem:[%s338 + $0xc0] sm:$0xff]
                  %389 = vst [vmem:[%s339 + $0xc0] sm:$0xff] %v388
                  %v390 = vld [vmem:[%s338 + $0xc8] sm:$0xff]
                  %391 = vst [vmem:[%s339 + $0xc8] sm:$0xff] %v390
                  %v392 = vld [vmem:[%s338 + $0xd0] sm:$0xff]
                  %393 = vst [vmem:[%s339 + $0xd0] sm:$0xff] %v392
                  %v394 = vld [vmem:[%s338 + $0xd8] sm:$0xff]
                  %395 = vst [vmem:[%s339 + $0xd8] sm:$0xff] %v394
                  %v396 = vld [vmem:[%s338 + $0xe0] sm:$0xff]
                  %397 = vst [vmem:[%s339 + $0xe0] sm:$0xff] %v396
                  %v398 = vld [vmem:[%s338 + $0xe8] sm:$0xff]
                  %399 = vst [vmem:[%s339 + $0xe8] sm:$0xff] %v398
                  %v400 = vld [vmem:[%s338 + $0xf0] sm:$0xff]
                  %401 = vst [vmem:[%s339 + $0xf0] sm:$0xff] %v400
                  %v402 = vld [vmem:[%s338 + $0xf8] sm:$0xff]
                  %403 = vst [vmem:[%s339 + $0xf8] sm:$0xff] %v402
                  %v404 = vld [vmem:[%s338 + $0xc] sm:$0xff]
                  %405 = vst [vmem:[%s339 + $0x8] sm:$0xff] %v404
                  %v406 = vld [vmem:[%s338 + $0x14] sm:$0xff]
                  %407 = vst [vmem:[%s339 + $0x10] sm:$0xff] %v406
                  %v408 = vld [vmem:[%s338 + $0x1c] sm:$0xff]
                  %409 = vst [vmem:[%s339 + $0x18] sm:$0xff] %v408
                  %v410 = vld [vmem:[%s338 + $0x24] sm:$0xff]
                  %411 = vst [vmem:[%s339 + $0x20] sm:$0xff] %v410
                  %v412 = vld [vmem:[%s338 + $0x2c] sm:$0xff]
                  %413 = vst [vmem:[%s339 + $0x28] sm:$0xff] %v412
                  %v414 = vld [vmem:[%s338 + $0x34] sm:$0xff]
                  %415 = vst [vmem:[%s339 + $0x30] sm:$0xff] %v414
                  %v416 = vld [vmem:[%s338 + $0x3c] sm:$0xff]
                  %417 = vst [vmem:[%s339 + $0x38] sm:$0xff] %v416
                  %v418 = vld [vmem:[%s338 + $0x44] sm:$0xff]
                  %419 = vst [vmem:[%s339 + $0x40] sm:$0xff] %v418
                  %v420 = vld [vmem:[%s338 + $0x4c] sm:$0xff]
                  %421 = vst [vmem:[%s339 + $0x48] sm:$0xff] %v420
                  %v422 = vld [vmem:[%s338 + $0x54] sm:$0xff]
                  %423 = vst [vmem:[%s339 + $0x50] sm:$0xff] %v422
                  %v424 = vld [vmem:[%s338 + $0x5c] sm:$0xff]
                  %425 = vst [vmem:[%s339 + $0x58] sm:$0xff] %v424
                  %v426 = vld [vmem:[%s338 + $0x64] sm:$0xff]
                  %427 = vst [vmem:[%s339 + $0x60] sm:$0xff] %v426
                  %v428 = vld [vmem:[%s338 + $0x6c] sm:$0xff]
                  %429 = vst [vmem:[%s339 + $0x68] sm:$0xff] %v428
                  %v430 = vld [vmem:[%s338 + $0x74] sm:$0xff]
                  %431 = vst [vmem:[%s339 + $0x70] sm:$0xff] %v430
                  %v432 = vld [vmem:[%s338 + $0x7c] sm:$0xff]
                  %433 = vst [vmem:[%s339 + $0x78] sm:$0xff] %v432
                  %v434 = vld [vmem:[%s338 + $0x84] sm:$0xff]
                  %435 = vst [vmem:[%s339 + $0x80] sm:$0xff] %v434
                  %v436 = vld [vmem:[%s338 + $0x8c] sm:$0xff]
                  %437 = vst [vmem:[%s339 + $0x88] sm:$0xff] %v436
                  %v438 = vld [vmem:[%s338 + $0x94] sm:$0xff]
                  %439 = vst [vmem:[%s339 + $0x90] sm:$0xff] %v438
                  %v440 = vld [vmem:[%s338 + $0x9c] sm:$0xff]
                  %441 = vst [vmem:[%s339 + $0x98] sm:$0xff] %v440
                  %v442 = vld [vmem:[%s338 + $0xa4] sm:$0xff]
                  %443 = vst [vmem:[%s339 + $0xa0] sm:$0xff] %v442
                  %v444 = vld [vmem:[%s338 + $0xac] sm:$0xff]
                  %445 = vst [vmem:[%s339 + $0xa8] sm:$0xff] %v444
                  %v446 = vld [vmem:[%s338 + $0xb4] sm:$0xff]
                  %447 = vst [vmem:[%s339 + $0xb0] sm:$0xff] %v446
                  %v448 = vld [vmem:[%s338 + $0xbc] sm:$0xff]
                  %449 = vst [vmem:[%s339 + $0xb8] sm:$0xff] %v448
                  %v450 = vld [vmem:[%s338 + $0xc4] sm:$0xff]
                  %451 = vst [vmem:[%s339 + $0xc0] sm:$0xff] %v450
                  %v452 = vld [vmem:[%s338 + $0xcc] sm:$0xff]
                  %453 = vst [vmem:[%s339 + $0xc8] sm:$0xff] %v452
                  %v454 = vld [vmem:[%s338 + $0xd4] sm:$0xff]
                  %455 = vst [vmem:[%s339 + $0xd0] sm:$0xff] %v454
                  %v456 = vld [vmem:[%s338 + $0xdc] sm:$0xff]
                  %457 = vst [vmem:[%s339 + $0xd8] sm:$0xff] %v456
                  %v458 = vld [vmem:[%s338 + $0xe4] sm:$0xff]
                  %459 = vst [vmem:[%s339 + $0xe0] sm:$0xff] %v458
                  %v460 = vld [vmem:[%s338 + $0xec] sm:$0xff]
                  %461 = vst [vmem:[%s339 + $0xe8] sm:$0xff] %v460
                  %v462 = vld [vmem:[%s338 + $0xf4] sm:$0xff]
                  %463 = vst [vmem:[%s339 + $0xf0] sm:$0xff] %v462
                  %v464 = vld [vmem:[%s338 + $0xfc] sm:$0xff]
                  %465 = vst [vmem:[%s339 + $0xf8] sm:$0xff] %v464
                  %v466 = vld [vmem:[%s338 + $0x104] sm:$0xff]
                  %467 = vst [vmem:[%s339 + $0x100] sm:$0xff] %v466
                  %s468 = sadd.s32 1, %s337
                  %p469 = scmp.ge.s32.totalorder %s468, %s328
                  %s470 = scalar_select %p469, 0, %s468
                  %s471 = smul.u32 %s470, 256
                  %s472 = smul.u32 %s470, 256
                  %s473 = scalar_lea.vmem %s297, %s471
                  %s474 = scalar_lea.vmem %s289, %s472 [#allocation3]
                $region80: #{tpu_custom_call.1} parent=74 // loop_footer
                  %s334 = sadd.s32 %s332, 1
                $region81: #{tpu_custom_call.1} parent=74 // loop_footer_branch
                  %331 = sbr.rel target = $region77
                $region82: #{tpu_custom_call.1} parent=74 // loop_exit
                  _
                %s475 = sshrl.u32 %s327, 5
                %s476 = sand.u32 %s327, 31
                %s477 = smul.u32 %s475, 32
                %s478 = smul.u32 128, %s477
                %s479 = sshra.s32 %s478, 4
                %s480 = scalar_lea.vmem %s297, %s479
                %s481 = smul.u32 128, %s477
                %s482 = sshra.s32 %s481, 4
                %s483 = scalar_lea.vmem %s289, %s482 [#allocation3]
                // While loop
                $region83: #{tpu_custom_call.1} parent=74 // loop_pre_header
                  _
                $region84: #{tpu_custom_call.1} parent=74 // loop_header
                  %s487 = sphi 0, %s489
                  %p488 = scmp.ge.s32.totalorder %s487, %s476
                  %s492 = sphi 0, %s501
                  %s493 = sphi %s480, %s504
                  %s494 = sphi %s483, %s505
                $region85: #{tpu_custom_call.1} parent=74 // loop_header_branch
                  %491 = sbr.rel (%p488) target = $region89
                $region86: #{tpu_custom_call.1} parent=74 // loop_body
                  %v495 = vld [vmem:[%s493] sm:$0xff]
                  %496 = vst [vmem:[%s494] sm:$0xff] %v495
                  %v497 = vld [vmem:[%s493 + $0xc] sm:$0xff]
                  %498 = vst [vmem:[%s494 + $0x8] sm:$0xff] %v497
                  %s499 = sadd.s32 1, %s492
                  %p500 = scmp.ge.s32.totalorder %s499, %s476
                  %s501 = scalar_select %p500, 0, %s499
                  %s502 = smul.u32 %s501, 8
                  %s503 = smul.u32 %s501, 8
                  %s504 = scalar_lea.vmem %s480, %s502
                  %s505 = scalar_lea.vmem %s483, %s503 [#allocation3]
                $region87: #{tpu_custom_call.1} parent=74 // loop_footer
                  %s489 = sadd.s32 %s487, 1
                $region88: #{tpu_custom_call.1} parent=74 // loop_footer_branch
                  %486 = sbr.rel target = $region84
                $region89: #{tpu_custom_call.1} parent=74 // loop_exit
                  _
              $region75: #{tpu_custom_call.1} parent=59 // pred_fallthru
                _
              %p506 = pneg %p323
              // Predicated region
              $region90: #{tpu_custom_call.1} parent=59 // pred_check
                _
              $region91: #{tpu_custom_call.1} parent=59 // pred_check_branch
                %508 = sbr.rel (%p323) target = $region93
              $region92: #{tpu_custom_call.1} parent=59 // pred_region
                %s509 = sand.u32 %s298, 7
                %s510 = ssub.s32 %s298, %s509
                %s511 = scalar_lea.vmem %s297, %s510
                %s512 = ssub.s32 %s298, %s509
                %s513 = scalar_lea.vmem %s289, %s512 [#allocation3]
                %s514 = sshrl.u32 %s298, 3
                %s515 = sshrl.u32 %s514, 5
                // While loop
                $region94: #{tpu_custom_call.1} parent=92 // loop_pre_header
                  _
                $region95: #{tpu_custom_call.1} parent=92 // loop_header
                  %s519 = sphi 0, %s521
                  %p520 = scmp.ge.s32.totalorder %s519, %s515
                  %s524 = sphi 0, %s657
                  %s525 = sphi %s297, %s660
                  %s526 = sphi %s289, %s661
                $region96: #{tpu_custom_call.1} parent=92 // loop_header_branch
                  %523 = sbr.rel (%p520) target = $region100
                $region97: #{tpu_custom_call.1} parent=92 // loop_body
                  %v527 = vld [vmem:[%s525] sm:$0xff]
                  %528 = vst [vmem:[%s526] sm:$0xff] %v527
                  %v529 = vld [vmem:[%s525 + $0x8] sm:$0xff]
                  %530 = vst [vmem:[%s526 + $0x8] sm:$0xff] %v529
                  %v531 = vld [vmem:[%s525 + $0x10] sm:$0xff]
                  %532 = vst [vmem:[%s526 + $0x10] sm:$0xff] %v531
                  %v533 = vld [vmem:[%s525 + $0x18] sm:$0xff]
                  %534 = vst [vmem:[%s526 + $0x18] sm:$0xff] %v533
                  %v535 = vld [vmem:[%s525 + $0x20] sm:$0xff]
                  %536 = vst [vmem:[%s526 + $0x20] sm:$0xff] %v535
                  %v537 = vld [vmem:[%s525 + $0x28] sm:$0xff]
                  %538 = vst [vmem:[%s526 + $0x28] sm:$0xff] %v537
                  %v539 = vld [vmem:[%s525 + $0x30] sm:$0xff]
                  %540 = vst [vmem:[%s526 + $0x30] sm:$0xff] %v539
                  %v541 = vld [vmem:[%s525 + $0x38] sm:$0xff]
                  %542 = vst [vmem:[%s526 + $0x38] sm:$0xff] %v541
                  %v543 = vld [vmem:[%s525 + $0x40] sm:$0xff]
                  %544 = vst [vmem:[%s526 + $0x40] sm:$0xff] %v543
                  %v545 = vld [vmem:[%s525 + $0x48] sm:$0xff]
                  %546 = vst [vmem:[%s526 + $0x48] sm:$0xff] %v545
                  %v547 = vld [vmem:[%s525 + $0x50] sm:$0xff]
                  %548 = vst [vmem:[%s526 + $0x50] sm:$0xff] %v547
                  %v549 = vld [vmem:[%s525 + $0x58] sm:$0xff]
                  %550 = vst [vmem:[%s526 + $0x58] sm:$0xff] %v549
                  %v551 = vld [vmem:[%s525 + $0x60] sm:$0xff]
                  %552 = vst [vmem:[%s526 + $0x60] sm:$0xff] %v551
                  %v553 = vld [vmem:[%s525 + $0x68] sm:$0xff]
                  %554 = vst [vmem:[%s526 + $0x68] sm:$0xff] %v553
                  %v555 = vld [vmem:[%s525 + $0x70] sm:$0xff]
                  %556 = vst [vmem:[%s526 + $0x70] sm:$0xff] %v555
                  %v557 = vld [vmem:[%s525 + $0x78] sm:$0xff]
                  %558 = vst [vmem:[%s526 + $0x78] sm:$0xff] %v557
                  %v559 = vld [vmem:[%s525 + $0x80] sm:$0xff]
                  %560 = vst [vmem:[%s526 + $0x80] sm:$0xff] %v559
                  %v561 = vld [vmem:[%s525 + $0x88] sm:$0xff]
                  %562 = vst [vmem:[%s526 + $0x88] sm:$0xff] %v561
                  %v563 = vld [vmem:[%s525 + $0x90] sm:$0xff]
                  %564 = vst [vmem:[%s526 + $0x90] sm:$0xff] %v563
                  %v565 = vld [vmem:[%s525 + $0x98] sm:$0xff]
                  %566 = vst [vmem:[%s526 + $0x98] sm:$0xff] %v565
                  %v567 = vld [vmem:[%s525 + $0xa0] sm:$0xff]
                  %568 = vst [vmem:[%s526 + $0xa0] sm:$0xff] %v567
                  %v569 = vld [vmem:[%s525 + $0xa8] sm:$0xff]
                  %570 = vst [vmem:[%s526 + $0xa8] sm:$0xff] %v569
                  %v571 = vld [vmem:[%s525 + $0xb0] sm:$0xff]
                  %572 = vst [vmem:[%s526 + $0xb0] sm:$0xff] %v571
                  %v573 = vld [vmem:[%s525 + $0xb8] sm:$0xff]
                  %574 = vst [vmem:[%s526 + $0xb8] sm:$0xff] %v573
                  %v575 = vld [vmem:[%s525 + $0xc0] sm:$0xff]
                  %576 = vst [vmem:[%s526 + $0xc0] sm:$0xff] %v575
                  %v577 = vld [vmem:[%s525 + $0xc8] sm:$0xff]
                  %578 = vst [vmem:[%s526 + $0xc8] sm:$0xff] %v577
                  %v579 = vld [vmem:[%s525 + $0xd0] sm:$0xff]
                  %580 = vst [vmem:[%s526 + $0xd0] sm:$0xff] %v579
                  %v581 = vld [vmem:[%s525 + $0xd8] sm:$0xff]
                  %582 = vst [vmem:[%s526 + $0xd8] sm:$0xff] %v581
                  %v583 = vld [vmem:[%s525 + $0xe0] sm:$0xff]
                  %584 = vst [vmem:[%s526 + $0xe0] sm:$0xff] %v583
                  %v585 = vld [vmem:[%s525 + $0xe8] sm:$0xff]
                  %586 = vst [vmem:[%s526 + $0xe8] sm:$0xff] %v585
                  %v587 = vld [vmem:[%s525 + $0xf0] sm:$0xff]
                  %588 = vst [vmem:[%s526 + $0xf0] sm:$0xff] %v587
                  %v589 = vld [vmem:[%s525 + $0xf8] sm:$0xff]
                  %590 = vst [vmem:[%s526 + $0xf8] sm:$0xff] %v589
                  %v591 = vld [vmem:[%s525 + $0xc] sm:$0xff]
                  %592 = vst [vmem:[%s526 + $0x8] sm:$0xff] %v591
                  %v593 = vld [vmem:[%s525 + $0x14] sm:$0xff]
                  %594 = vst [vmem:[%s526 + $0x10] sm:$0xff] %v593
                  %v595 = vld [vmem:[%s525 + $0x1c] sm:$0xff]
                  %596 = vst [vmem:[%s526 + $0x18] sm:$0xff] %v595
                  %v597 = vld [vmem:[%s525 + $0x24] sm:$0xff]
                  %598 = vst [vmem:[%s526 + $0x20] sm:$0xff] %v597
                  %v599 = vld [vmem:[%s525 + $0x2c] sm:$0xff]
                  %600 = vst [vmem:[%s526 + $0x28] sm:$0xff] %v599
                  %v601 = vld [vmem:[%s525 + $0x34] sm:$0xff]
                  %602 = vst [vmem:[%s526 + $0x30] sm:$0xff] %v601
                  %v603 = vld [vmem:[%s525 + $0x3c] sm:$0xff]
                  %604 = vst [vmem:[%s526 + $0x38] sm:$0xff] %v603
                  %v605 = vld [vmem:[%s525 + $0x44] sm:$0xff]
                  %606 = vst [vmem:[%s526 + $0x40] sm:$0xff] %v605
                  %v607 = vld [vmem:[%s525 + $0x4c] sm:$0xff]
                  %608 = vst [vmem:[%s526 + $0x48] sm:$0xff] %v607
                  %v609 = vld [vmem:[%s525 + $0x54] sm:$0xff]
                  %610 = vst [vmem:[%s526 + $0x50] sm:$0xff] %v609
                  %v611 = vld [vmem:[%s525 + $0x5c] sm:$0xff]
                  %612 = vst [vmem:[%s526 + $0x58] sm:$0xff] %v611
                  %v613 = vld [vmem:[%s525 + $0x64] sm:$0xff]
                  %614 = vst [vmem:[%s526 + $0x60] sm:$0xff] %v613
                  %v615 = vld [vmem:[%s525 + $0x6c] sm:$0xff]
                  %616 = vst [vmem:[%s526 + $0x68] sm:$0xff] %v615
                  %v617 = vld [vmem:[%s525 + $0x74] sm:$0xff]
                  %618 = vst [vmem:[%s526 + $0x70] sm:$0xff] %v617
                  %v619 = vld [vmem:[%s525 + $0x7c] sm:$0xff]
                  %620 = vst [vmem:[%s526 + $0x78] sm:$0xff] %v619
                  %v621 = vld [vmem:[%s525 + $0x84] sm:$0xff]
                  %622 = vst [vmem:[%s526 + $0x80] sm:$0xff] %v621
                  %v623 = vld [vmem:[%s525 + $0x8c] sm:$0xff]
                  %624 = vst [vmem:[%s526 + $0x88] sm:$0xff] %v623
                  %v625 = vld [vmem:[%s525 + $0x94] sm:$0xff]
                  %626 = vst [vmem:[%s526 + $0x90] sm:$0xff] %v625
                  %v627 = vld [vmem:[%s525 + $0x9c] sm:$0xff]
                  %628 = vst [vmem:[%s526 + $0x98] sm:$0xff] %v627
                  %v629 = vld [vmem:[%s525 + $0xa4] sm:$0xff]
                  %630 = vst [vmem:[%s526 + $0xa0] sm:$0xff] %v629
                  %v631 = vld [vmem:[%s525 + $0xac] sm:$0xff]
                  %632 = vst [vmem:[%s526 + $0xa8] sm:$0xff] %v631
                  %v633 = vld [vmem:[%s525 + $0xb4] sm:$0xff]
                  %634 = vst [vmem:[%s526 + $0xb0] sm:$0xff] %v633
                  %v635 = vld [vmem:[%s525 + $0xbc] sm:$0xff]
                  %636 = vst [vmem:[%s526 + $0xb8] sm:$0xff] %v635
                  %v637 = vld [vmem:[%s525 + $0xc4] sm:$0xff]
                  %638 = vst [vmem:[%s526 + $0xc0] sm:$0xff] %v637
                  %v639 = vld [vmem:[%s525 + $0xcc] sm:$0xff]
                  %640 = vst [vmem:[%s526 + $0xc8] sm:$0xff] %v639
                  %v641 = vld [vmem:[%s525 + $0xd4] sm:$0xff]
                  %642 = vst [vmem:[%s526 + $0xd0] sm:$0xff] %v641
                  %v643 = vld [vmem:[%s525 + $0xdc] sm:$0xff]
                  %644 = vst [vmem:[%s526 + $0xd8] sm:$0xff] %v643
                  %v645 = vld [vmem:[%s525 + $0xe4] sm:$0xff]
                  %646 = vst [vmem:[%s526 + $0xe0] sm:$0xff] %v645
                  %v647 = vld [vmem:[%s525 + $0xec] sm:$0xff]
                  %648 = vst [vmem:[%s526 + $0xe8] sm:$0xff] %v647
                  %v649 = vld [vmem:[%s525 + $0xf4] sm:$0xff]
                  %650 = vst [vmem:[%s526 + $0xf0] sm:$0xff] %v649
                  %v651 = vld [vmem:[%s525 + $0xfc] sm:$0xff]
                  %652 = vst [vmem:[%s526 + $0xf8] sm:$0xff] %v651
                  %v653 = vld [vmem:[%s525 + $0x104] sm:$0xff]
                  %654 = vst [vmem:[%s526 + $0x100] sm:$0xff] %v653
                  %s655 = sadd.s32 1, %s524
                  %p656 = scmp.ge.s32.totalorder %s655, %s515
                  %s657 = scalar_select %p656, 0, %s655
                  %s658 = smul.u32 %s657, 256
                  %s659 = smul.u32 %s657, 256
                  %s660 = scalar_lea.vmem %s297, %s658
                  %s661 = scalar_lea.vmem %s289, %s659 [#allocation3]
                $region98: #{tpu_custom_call.1} parent=92 // loop_footer
                  %s521 = sadd.s32 %s519, 1
                $region99: #{tpu_custom_call.1} parent=92 // loop_footer_branch
                  %518 = sbr.rel target = $region95
                $region100: #{tpu_custom_call.1} parent=92 // loop_exit
                  _
                %s662 = sshrl.u32 %s514, 5
                %s663 = sand.u32 %s514, 31
                %s664 = smul.u32 %s662, 32
                %s665 = smul.u32 128, %s664
                %s666 = sshra.s32 %s665, 4
                %s667 = scalar_lea.vmem %s297, %s666
                %s668 = smul.u32 128, %s664
                %s669 = sshra.s32 %s668, 4
                %s670 = scalar_lea.vmem %s289, %s669 [#allocation3]
                // While loop
                $region101: #{tpu_custom_call.1} parent=92 // loop_pre_header
                  _
                $region102: #{tpu_custom_call.1} parent=92 // loop_header
                  %s674 = sphi 0, %s676
                  %p675 = scmp.ge.s32.totalorder %s674, %s663
                  %s679 = sphi 0, %s688
                  %s680 = sphi %s667, %s691
                  %s681 = sphi %s670, %s692
                $region103: #{tpu_custom_call.1} parent=92 // loop_header_branch
                  %678 = sbr.rel (%p675) target = $region107
                $region104: #{tpu_custom_call.1} parent=92 // loop_body
                  %v682 = vld [vmem:[%s680] sm:$0xff]
                  %683 = vst [vmem:[%s681] sm:$0xff] %v682
                  %v684 = vld [vmem:[%s680 + $0xc] sm:$0xff]
                  %685 = vst [vmem:[%s681 + $0x8] sm:$0xff] %v684
                  %s686 = sadd.s32 1, %s679
                  %p687 = scmp.ge.s32.totalorder %s686, %s663
                  %s688 = scalar_select %p687, 0, %s686
                  %s689 = smul.u32 %s688, 8
                  %s690 = smul.u32 %s688, 8
                  %s691 = scalar_lea.vmem %s667, %s689
                  %s692 = scalar_lea.vmem %s670, %s690 [#allocation3]
                $region105: #{tpu_custom_call.1} parent=92 // loop_footer
                  %s676 = sadd.s32 %s674, 1
                $region106: #{tpu_custom_call.1} parent=92 // loop_footer_branch
                  %673 = sbr.rel target = $region102
                $region107: #{tpu_custom_call.1} parent=92 // loop_exit
                  _
                %s693 = sshllo.u32 0, %s509
                loop: start=0, step=1, limit=1
                $region108: #{tpu_custom_call.1} parent=92 // loop_pre_header
                  _
                $region109: #{tpu_custom_call.1} parent=92 // loop_header
                  %s695 = sphi 0, %s699
                  %p696 = scmp.ge.s32.totalorder %s695, 1
                  %s700 = sphi %s511, %s511
                  %s701 = sphi %s513, %s513
                $region110: #{tpu_custom_call.1} parent=92 // loop_header_branch
                  %698 = sbr.rel (%p696) target = $region114
                $region111: #{tpu_custom_call.1} parent=92 // loop_body
                  %v702 = vld [vmem:[%s700] sm:%s693]
                  %703 = vst [vmem:[%s701] sm:%s693] %v702
                  %v704 = vld [vmem:[%s700 + $0xc] sm:%s693]
                  %705 = vst [vmem:[%s701 + $0x8] sm:%s693] %v704
                $region112: #{tpu_custom_call.1} parent=92 // loop_footer
                  %s699 = sadd.s32 1, %s695
                $region113: #{tpu_custom_call.1} parent=92 // loop_footer_branch
                  %694 = sbr.rel target = $region109
                $region114: #{tpu_custom_call.1} parent=92 // loop_exit
                  _
              $region93: #{tpu_custom_call.1} parent=59 // pred_fallthru
                _
            $region60: #{tpu_custom_call.1} parent=55 // pred_fallthru
              _
            // Predicated region
            $region61: #{tpu_custom_call.1} parent=55 // pred_check
              %p306 = pneg %p302
            $region62: #{tpu_custom_call.1} parent=55 // pred_check_branch
              %308 = sbr.rel (%p306) target = $region64
            $region63: #{tpu_custom_call.1} parent=55 // pred_region
              %s309 = sshllo.u32 0, %s298
              loop: start=0, step=1, limit=1
              $region65: #{tpu_custom_call.1} parent=63 // loop_pre_header
                _
              $region66: #{tpu_custom_call.1} parent=63 // loop_header
                %s311 = sphi 0, %s315
                %p312 = scmp.ge.s32.totalorder %s311, 1
                %s316 = sphi %s297, %s297
                %s317 = sphi %s289, %s289
              $region67: #{tpu_custom_call.1} parent=63 // loop_header_branch
                %314 = sbr.rel (%p312) target = $region71
              $region68: #{tpu_custom_call.1} parent=63 // loop_body
                %v318 = vld [vmem:[%s316] sm:%s309]
                %319 = vst [vmem:[%s317] sm:%s309] %v318
                %v320 = vld [vmem:[%s316 + $0xc] sm:%s309]
                %321 = vst [vmem:[%s317 + $0x8] sm:%s309] %v320
              $region69: #{tpu_custom_call.1} parent=63 // loop_footer
                %s315 = sadd.s32 1, %s311
              $region70: #{tpu_custom_call.1} parent=63 // loop_footer_branch
                %310 = sbr.rel target = $region66
              $region71: #{tpu_custom_call.1} parent=63 // loop_exit
                _
            $region64: #{tpu_custom_call.1} parent=55 // pred_fallthru
              _
          $region56: #{tpu_custom_call.1} parent=51 // pred_fallthru
            _
          %706 = vnop
        $region52: #{tpu_custom_call.1} parent=47 // pred_fallthru
          _
      $region48: #{tpu_custom_call.1} parent=5 // pred_fallthru
        _
      %p707 = scmp.le.s32.totalorder 1, %s20
      %p708 = scmp.lt.s32.totalorder %s20, 3
      %p709 = pnand %p707, %p708
      %p710 = pneg %p709
      // Predicated region
      $region115: #{tpu_custom_call.1} parent=5 // pred_check
        _
      $region116: #{tpu_custom_call.1} parent=5 // pred_check_branch
        %712 = sbr.rel (%p709) target = $region118
      $region117: #{tpu_custom_call.1} parent=5 // pred_region
        %s713 = ssub.s32 %s20, 1
        %s714 = sand.u32 %s33, 1
        %s715 = sand.u32 %s33, 1
        %s716 = smul.addr %s715, 16
        %s717 = scalar_lea.vmem [#allocation3], %s716
        // Predicated region
        $region119: #{tpu_custom_call.1} parent=117 // pred_check
          %p718 = pneg %p46
        $region120: #{tpu_custom_call.1} parent=117 // pred_check_branch
          %720 = sbr.rel (%p718) target = $region122
        $region121: #{tpu_custom_call.1} parent=117 // pred_region
          _
        $region122: #{tpu_custom_call.1} parent=117 // pred_fallthru
          _
        %s721 = sand.u32 %s33, 1
        %s722 = sand.u32 %s33, 1
        %s723 = smul.addr %s722, 16
        %s724 = scalar_lea.vmem [#allocation3], %s723
        %p725 = pneg %p46
        %p726 = pneg %p43
        %p727 = pneg %p67
        %p728 = pneg %p64
        %p729 = pneg %p88
        %p730 = pneg %p85
        %p731 = pneg %p109
        %p732 = pneg %p106
        %p733 = pneg %p130
        %p734 = pneg %p127
        %p735 = pneg %p151
        %p736 = pneg %p148
        %p737 = pneg %p172
        %p738 = pneg %p169
        %p739 = pneg %p193
        %p740 = pneg %p190
        %p741 = pneg %p214
        %p742 = pneg %p211
        %p743 = pneg %p240
        %p744 = pneg %p237
        %s745 = sand.u32 %s227, 1
        %s746 = scalar_lea.sflag [#allocation5], %s745
        %s747 = sand.u32 %s227, 1
        %s748 = smul.addr %s747, 2
        %s749 = scalar_lea.vmem [#allocation4], %s748
        %s750 = smul.u32 2, %s25
        %s751 = ssub.s32 3, %s750
        %p752 = scmp.lt.s32.totalorder %s751, 2
        %s753 = scalar_select %p752, %s751, 2
        %s754 = smul.u32 128, %s753
        %s755 = smul.u32 2, %s25
        %s756 = ssub.s32 3, %s755
        %p757 = scmp.lt.s32.totalorder %s756, 2
        %s758 = scalar_select %p757, %s756, 2
        %s759 = smul.u32 16, %s758
        %v761 = vld [vmem:[%s717] sm:$0xff]
        %v762 = vld [vmem:[%s717 + $0x8] sm:$0xff]
        %v763 = vld [vmem:[%s1] sm:$0xf]
        %v764 = vld [vmem:[%s1 + $0x4] sm:$0xf]
        %v765 = vld [vmem:[%s1 + $0x8] sm:$0xf]
        %v766 = vld [vmem:[%s1 + $0xc] sm:$0xf]
        %v767 = vld [vmem:[%s1 + $0x10] sm:$0xf]
        %v768 = vld [vmem:[%s1 + $0x14] sm:$0xf]
        %v769 = vld [vmem:[%s1 + $0x18] sm:$0xf]
        %v770 = vld [vmem:[%s1 + $0x1c] sm:$0xf]
        %v771 = vld [vmem:[%s1 + $0x20] sm:$0xf]
        %v772 = vld [vmem:[%s1 + $0x24] sm:$0xf]
        %v773 = vld [vmem:[%s1 + $0x28] sm:$0xf]
        %v774 = vld [vmem:[%s1 + $0x2c] sm:$0xf]
        %v775 = vld [vmem:[%s1 + $0x30] sm:$0xf]
        %v776 = vld [vmem:[%s1 + $0x34] sm:$0xf]
        %v777 = vld [vmem:[%s1 + $0x38] sm:$0xf]
        %v778 = vld [vmem:[%s1 + $0x3c] sm:$0xf]
        %v779 = vld [vmem:[%s2] sm:$0xf]
        %v780 = vld [vmem:[%s2 + $0x4] sm:$0xf]
        %v781 = vld [vmem:[%s2 + $0x8] sm:$0xf]
        %v782 = vld [vmem:[%s2 + $0xc] sm:$0xf]
        %v783 = vld [vmem:[%s2 + $0x10] sm:$0xf]
        %v784 = vld [vmem:[%s2 + $0x14] sm:$0xf]
        %v785 = vld [vmem:[%s2 + $0x18] sm:$0xf]
        %v786 = vld [vmem:[%s2 + $0x1c] sm:$0xf]
        %v787 = vld [vmem:[%s2 + $0x20] sm:$0xf]
        %v788 = vld [vmem:[%s2 + $0x24] sm:$0xf]
        %v789 = vld [vmem:[%s2 + $0x28] sm:$0xf]
        %v790 = vld [vmem:[%s2 + $0x2c] sm:$0xf]
        %v791 = vld [vmem:[%s2 + $0x30] sm:$0xf]
        %v792 = vld [vmem:[%s2 + $0x34] sm:$0xf]
        %v793 = vld [vmem:[%s2 + $0x38] sm:$0xf]
        %v794 = vld [vmem:[%s2 + $0x3c] sm:$0xf]
        %v811 = vunpack.c.l.b16 %v763
        %v812 = vunpack.c.l.b16 %v764
        %v813 = vunpack.c.l.b16 %v765
        %v814 = vunpack.c.l.b16 %v766
        %v815 = vunpack.c.l.b16 %v767
        %v816 = vunpack.c.l.b16 %v768
        %v817 = vunpack.c.l.b16 %v769
        %v818 = vunpack.c.l.b16 %v770
        %v819 = vunpack.c.l.b16 %v771
        %v820 = vunpack.c.l.b16 %v772
        %v821 = vunpack.c.l.b16 %v773
        %v822 = vunpack.c.l.b16 %v774
        %v823 = vunpack.c.l.b16 %v775
        %v824 = vunpack.c.l.b16 %v776
        %v825 = vunpack.c.l.b16 %v777
        %v826 = vunpack.c.l.b16 %v778
        %v827 = vpack.c.b16 %v812, %v811
        %v828 = vpack.c.b16 %v814, %v813
        %v829 = vpack.c.b16 %v816, %v815
        %v830 = vpack.c.b16 %v818, %v817
        %v831 = vpack.c.b16 %v820, %v819
        %v832 = vpack.c.b16 %v822, %v821
        %v833 = vpack.c.b16 %v824, %v823
        %v834 = vpack.c.b16 %v826, %v825
        %v837 = vunpack.c.l.b16 %v761
        %v838 = vunpack.c.h.b16 %v761
        %v839 = vunpack.c.l.b16 %v762
        %v840 = vunpack.c.h.b16 %v762
        %v841 = vpack.c.b16 %v839, %v837
        %v842 = vpack.c.b16 %v840, %v838
        %vm845 = vcmask 130048
        %v847 = vsel %vm845, %v827, 0
        %v850 = vsel %vm845, %v828, 0
        %v853 = vsel %vm845, %v829, 0
        %v856 = vsel %vm845, %v830, 0
        %v859 = vsel %vm845, %v831, 0
        %v862 = vsel %vm845, %v832, 0
        %v865 = vsel %vm845, %v833, 0
        %v868 = vsel %vm845, %v834, 0
        %870 = vmatprep.subr.bf16.mxu0 %v842
        %871 = vmatpush1.bf16.msra.mxu0 %v841
        %872 = vmatprep.subr.bf16.mxu0 0
        %873 = vmatpush1.bf16.msra.mxu0 0
        %874 = vmatprep.subr.bf16.mxu0 0
        %875 = vmatpush1.bf16.msra.mxu0 0
        %876 = vmatprep.subr.bf16.mxu0 0
        %877 = vmatpush1.bf16.msra.mxu0 0
        %878 = vmatprep.subr.bf16.mxu0 0
        %879 = vmatpush1.bf16.msra.mxu0 0
        %880 = vmatprep.subr.bf16.mxu0 0
        %881 = vmatpush1.bf16.msra.mxu0 0
        %882 = vmatprep.subr.bf16.mxu0 0
        %883 = vmatpush1.bf16.msra.mxu0 0
        %884 = vmatprep.subr.bf16.mxu0 0
        %885 = vmatpush1.bf16.msra.mxu0 0
        %886 = vmatprep.subr.bf16.mxu0 0
        %887 = vmatpush1.bf16.msra.mxu0 0
        %888 = vmatprep.subr.bf16.mxu0 0
        %889 = vmatpush1.bf16.msra.mxu0 0
        %890 = vmatprep.subr.bf16.mxu0 0
        %891 = vmatpush1.bf16.msra.mxu0 0
        %892 = vmatprep.subr.bf16.mxu0 0
        %893 = vmatpush1.bf16.msra.mxu0 0
        %894 = vmatprep.subr.bf16.mxu0 0
        %895 = vmatpush1.bf16.msra.mxu0 0
        %896 = vmatprep.subr.bf16.mxu0 0
        %897 = vmatpush1.bf16.msra.mxu0 0
        %898 = vmatprep.subr.bf16.mxu0 0
        %899 = vmatpush1.bf16.msra.mxu0 0
        %900 = vmatprep.subr.bf16.mxu0 0
        %901 = vmatpush1.bf16.msra.mxu0 0
        %902 = vmatprep.mubr.bf16.mxu0 0
        %903 = vmatmul.mubr.bf16.gmra.mrb[0].mxu0 %v847
        %v904 = vpop.f32.mrb[0].mxu0
        %v905 = vadd.f32 0.0, %v904
        %v906 = vpop.f32.mrb[0].mxu0
        %v907 = vadd.f32 0.0, %v906
        %v908 = vpop.f32.mrb[0].mxu0
        %v909 = vadd.f32 0.0, %v908
        %v910 = vpop.f32.mrb[0].mxu0
        %v911 = vadd.f32 0.0, %v910
        %912 = vmatprep.mubr.bf16.mxu0 0
        %913 = vmatmul.mubr.bf16.gmra.mrb[0].mxu0 %v850
        %v914 = vpop.f32.mrb[0].mxu0
        %v915 = vadd.f32 0.0, %v914
        %v916 = vpop.f32.mrb[0].mxu0
        %v917 = vadd.f32 0.0, %v916
        %v918 = vpop.f32.mrb[0].mxu0
        %v919 = vadd.f32 0.0, %v918
        %v920 = vpop.f32.mrb[0].mxu0
        %v921 = vadd.f32 0.0, %v920
        %922 = vmatprep.mubr.bf16.mxu0 0
        %923 = vmatmul.mubr.bf16.gmra.mrb[0].mxu0 %v853
        %v924 = vpop.f32.mrb[0].mxu0
        %v925 = vadd.f32 0.0, %v924
        %v926 = vpop.f32.mrb[0].mxu0
        %v927 = vadd.f32 0.0, %v926
        %v928 = vpop.f32.mrb[0].mxu0
        %v929 = vadd.f32 0.0, %v928
        %v930 = vpop.f32.mrb[0].mxu0
        %v931 = vadd.f32 0.0, %v930
        %932 = vmatprep.mubr.bf16.mxu0 0
        %933 = vmatmul.mubr.bf16.gmra.mrb[0].mxu0 %v856
        %v934 = vpop.f32.mrb[0].mxu0
        %v935 = vadd.f32 0.0, %v934
        %v936 = vpop.f32.mrb[0].mxu0
        %v937 = vadd.f32 0.0, %v936
        %v938 = vpop.f32.mrb[0].mxu0
        %v939 = vadd.f32 0.0, %v938
        %v940 = vpop.f32.mrb[0].mxu0
        %v941 = vadd.f32 0.0, %v940
        %942 = vmatprep.mubr.bf16.mxu0 0
        %943 = vmatmul.mubr.bf16.gmra.mrb[0].mxu0 %v859
        %v944 = vpop.f32.mrb[0].mxu0
        %v945 = vadd.f32 0.0, %v944
        %v946 = vpop.f32.mrb[0].mxu0
        %v947 = vadd.f32 0.0, %v946
        %v948 = vpop.f32.mrb[0].mxu0
        %v949 = vadd.f32 0.0, %v948
        %v950 = vpop.f32.mrb[0].mxu0
        %v951 = vadd.f32 0.0, %v950
        %952 = vmatprep.mubr.bf16.mxu0 0
        %953 = vmatmul.mubr.bf16.gmra.mrb[0].mxu0 %v862
        %v954 = vpop.f32.mrb[0].mxu0
        %v955 = vadd.f32 0.0, %v954
        %v956 = vpop.f32.mrb[0].mxu0
        %v957 = vadd.f32 0.0, %v956
        %v958 = vpop.f32.mrb[0].mxu0
        %v959 = vadd.f32 0.0, %v958
        %v960 = vpop.f32.mrb[0].mxu0
        %v961 = vadd.f32 0.0, %v960
        %962 = vmatprep.mubr.bf16.mxu0 0
        %963 = vmatmul.mubr.bf16.gmra.mrb[0].mxu0 %v865
        %v964 = vpop.f32.mrb[0].mxu0
        %v965 = vadd.f32 0.0, %v964
        %v966 = vpop.f32.mrb[0].mxu0
        %v967 = vadd.f32 0.0, %v966
        %v968 = vpop.f32.mrb[0].mxu0
        %v969 = vadd.f32 0.0, %v968
        %v970 = vpop.f32.mrb[0].mxu0
        %v971 = vadd.f32 0.0, %v970
        %972 = vmatprep.mubr.bf16.mxu0 0
        %973 = vmatmul.mubr.bf16.gmra.mrb[0].mxu0 %v868
        %v974 = vpop.f32.mrb[0].mxu0
        %v975 = vadd.f32 0.0, %v974
        %v976 = vpop.f32.mrb[0].mxu0
        %v977 = vadd.f32 0.0, %v976
        %v978 = vpop.f32.mrb[0].mxu0
        %v979 = vadd.f32 0.0, %v978
        %v980 = vpop.f32.mrb[0].mxu0
        %v981 = vadd.f32 0.0, %v980
        %982 = vdwg.mxu0
        %v983 = vpack.c.bf16 %v909, %v905
        %v984 = vpack.c.bf16 %v911, %v907
        %v985 = vpack.c.bf16 %v919, %v915
        %v986 = vpack.c.bf16 %v921, %v917
        %v987 = vpack.c.bf16 %v929, %v925
        %v988 = vpack.c.bf16 %v931, %v927
        %v989 = vpack.c.bf16 %v939, %v935
        %v990 = vpack.c.bf16 %v941, %v937
        %v991 = vpack.c.bf16 %v949, %v945
        %v992 = vpack.c.bf16 %v951, %v947
        %v993 = vpack.c.bf16 %v959, %v955
        %v994 = vpack.c.bf16 %v961, %v957
        %v995 = vpack.c.bf16 %v969, %v965
        %v996 = vpack.c.bf16 %v971, %v967
        %v997 = vpack.c.bf16 %v979, %v975
        %v998 = vpack.c.bf16 %v981, %v977
        %1000 = vset.pattern.permute.xlu0 0
        %1001 = vperm.xlu0 %1000, %v779
        %v1002 = vpop.permute.xlu0 %1001
        %v1005 = vunpack.c.l.s4 839922192
        %v1006 = vunpack.c.0.s8 %v1005
        %v1007 = vlaneseq
        %v1008 = vshrl.u32 %v1007, 7
        %v1009 = vsub.s32 %v1006, %v1008
        %v1010 = vrot.slane %v1002, %v1009
        %1012 = vset.pattern.permute.xlu0 0
        %1013 = vperm.xlu0 %1012, %v780
        %v1014 = vpop.permute.xlu0 %1013
        %v1017 = vunpack.c.l.s4 839922192
        %v1018 = vunpack.c.0.s8 %v1017
        %v1019 = vlaneseq
        %v1020 = vshrl.u32 %v1019, 7
        %v1021 = vsub.s32 %v1018, %v1020
        %v1022 = vrot.slane %v1014, %v1021
        %1024 = vset.pattern.permute.xlu0 0
        %1025 = vperm.xlu0 %1024, %v781
        %v1026 = vpop.permute.xlu0 %1025
        %v1029 = vunpack.c.l.s4 839922192
        %v1030 = vunpack.c.0.s8 %v1029
        %v1031 = vlaneseq
        %v1032 = vshrl.u32 %v1031, 7
        %v1033 = vsub.s32 %v1030, %v1032
        %v1034 = vrot.slane %v1026, %v1033
        %1036 = vset.pattern.permute.xlu0 0
        %1037 = vperm.xlu0 %1036, %v782
        %v1038 = vpop.permute.xlu0 %1037
        %v1041 = vunpack.c.l.s4 839922192
        %v1042 = vunpack.c.0.s8 %v1041
        %v1043 = vlaneseq
        %v1044 = vshrl.u32 %v1043, 7
        %v1045 = vsub.s32 %v1042, %v1044
        %v1046 = vrot.slane %v1038, %v1045
        %1048 = vset.pattern.permute.xlu0 0
        %1049 = vperm.xlu0 %1048, %v783
        %v1050 = vpop.permute.xlu0 %1049
        %v1053 = vunpack.c.l.s4 839922192
        %v1054 = vunpack.c.0.s8 %v1053
        %v1055 = vlaneseq
        %v1056 = vshrl.u32 %v1055, 7
        %v1057 = vsub.s32 %v1054, %v1056
        %v1058 = vrot.slane %v1050, %v1057
        %1060 = vset.pattern.permute.xlu0 0
        %1061 = vperm.xlu0 %1060, %v784
        %v1062 = vpop.permute.xlu0 %1061
        %v1065 = vunpack.c.l.s4 839922192
        %v1066 = vunpack.c.0.s8 %v1065
        %v1067 = vlaneseq
        %v1068 = vshrl.u32 %v1067, 7
        %v1069 = vsub.s32 %v1066, %v1068
        %v1070 = vrot.slane %v1062, %v1069
        %1072 = vset.pattern.permute.xlu0 0
        %1073 = vperm.xlu0 %1072, %v785
        %v1074 = vpop.permute.xlu0 %1073
        %v1077 = vunpack.c.l.s4 839922192
        %v1078 = vunpack.c.0.s8 %v1077
        %v1079 = vlaneseq
        %v1080 = vshrl.u32 %v1079, 7
        %v1081 = vsub.s32 %v1078, %v1080
        %v1082 = vrot.slane %v1074, %v1081
        %1084 = vset.pattern.permute.xlu0 0
        %1085 = vperm.xlu0 %1084, %v786
        %v1086 = vpop.permute.xlu0 %1085
        %v1089 = vunpack.c.l.s4 839922192
        %v1090 = vunpack.c.0.s8 %v1089
        %v1091 = vlaneseq
        %v1092 = vshrl.u32 %v1091, 7
        %v1093 = vsub.s32 %v1090, %v1092
        %v1094 = vrot.slane %v1086, %v1093
        %1096 = vset.pattern.permute.xlu0 0
        %1097 = vperm.xlu0 %1096, %v787
        %v1098 = vpop.permute.xlu0 %1097
        %v1101 = vunpack.c.l.s4 839922192
        %v1102 = vunpack.c.0.s8 %v1101
        %v1103 = vlaneseq
        %v1104 = vshrl.u32 %v1103, 7
        %v1105 = vsub.s32 %v1102, %v1104
        %v1106 = vrot.slane %v1098, %v1105
        %1108 = vset.pattern.permute.xlu0 0
        %1109 = vperm.xlu0 %1108, %v788
        %v1110 = vpop.permute.xlu0 %1109
        %v1113 = vunpack.c.l.s4 839922192
        %v1114 = vunpack.c.0.s8 %v1113
        %v1115 = vlaneseq
        %v1116 = vshrl.u32 %v1115, 7
        %v1117 = vsub.s32 %v1114, %v1116
        %v1118 = vrot.slane %v1110, %v1117
        %1120 = vset.pattern.permute.xlu0 0
        %1121 = vperm.xlu0 %1120, %v789
        %v1122 = vpop.permute.xlu0 %1121
        %v1125 = vunpack.c.l.s4 839922192
        %v1126 = vunpack.c.0.s8 %v1125
        %v1127 = vlaneseq
        %v1128 = vshrl.u32 %v1127, 7
        %v1129 = vsub.s32 %v1126, %v1128
        %v1130 = vrot.slane %v1122, %v1129
        %1132 = vset.pattern.permute.xlu0 0
        %1133 = vperm.xlu0 %1132, %v790
        %v1134 = vpop.permute.xlu0 %1133
        %v1137 = vunpack.c.l.s4 839922192
        %v1138 = vunpack.c.0.s8 %v1137
        %v1139 = vlaneseq
        %v1140 = vshrl.u32 %v1139, 7
        %v1141 = vsub.s32 %v1138, %v1140
        %v1142 = vrot.slane %v1134, %v1141
        %1144 = vset.pattern.permute.xlu0 0
        %1145 = vperm.xlu0 %1144, %v791
        %v1146 = vpop.permute.xlu0 %1145
        %v1149 = vunpack.c.l.s4 839922192
        %v1150 = vunpack.c.0.s8 %v1149
        %v1151 = vlaneseq
        %v1152 = vshrl.u32 %v1151, 7
        %v1153 = vsub.s32 %v1150, %v1152
        %v1154 = vrot.slane %v1146, %v1153
        %1156 = vset.pattern.permute.xlu0 0
        %1157 = vperm.xlu0 %1156, %v792
        %v1158 = vpop.permute.xlu0 %1157
        %v1161 = vunpack.c.l.s4 839922192
        %v1162 = vunpack.c.0.s8 %v1161
        %v1163 = vlaneseq
        %v1164 = vshrl.u32 %v1163, 7
        %v1165 = vsub.s32 %v1162, %v1164
        %v1166 = vrot.slane %v1158, %v1165
        %1168 = vset.pattern.permute.xlu0 0
        %1169 = vperm.xlu0 %1168, %v793
        %v1170 = vpop.permute.xlu0 %1169
        %v1173 = vunpack.c.l.s4 839922192
        %v1174 = vunpack.c.0.s8 %v1173
        %v1175 = vlaneseq
        %v1176 = vshrl.u32 %v1175, 7
        %v1177 = vsub.s32 %v1174, %v1176
        %v1178 = vrot.slane %v1170, %v1177
        %1180 = vset.pattern.permute.xlu0 0
        %1181 = vperm.xlu0 %1180, %v794
        %v1182 = vpop.permute.xlu0 %1181
        %v1185 = vunpack.c.l.s4 839922192
        %v1186 = vunpack.c.0.s8 %v1185
        %v1187 = vlaneseq
        %v1188 = vshrl.u32 %v1187, 7
        %v1189 = vsub.s32 %v1186, %v1188
        %v1190 = vrot.slane %v1182, %v1189
        %v1207 = vunpack.c.l.b16 %v1010
        %v1208 = vunpack.c.l.b16 %v1022
        %v1209 = vunpack.c.l.b16 %v1034
        %v1210 = vunpack.c.l.b16 %v1046
        %v1211 = vunpack.c.l.b16 %v1058
        %v1212 = vunpack.c.l.b16 %v1070
        %v1213 = vunpack.c.l.b16 %v1082
        %v1214 = vunpack.c.l.b16 %v1094
        %v1215 = vunpack.c.l.b16 %v1106
        %v1216 = vunpack.c.l.b16 %v1118
        %v1217 = vunpack.c.l.b16 %v1130
        %v1218 = vunpack.c.l.b16 %v1142
        %v1219 = vunpack.c.l.b16 %v1154
        %v1220 = vunpack.c.l.b16 %v1166
        %v1221 = vunpack.c.l.b16 %v1178
        %v1222 = vunpack.c.l.b16 %v1190
        %v1223 = vpack.c.b16 %v1208, %v1207
        %v1224 = vpack.c.b16 %v1210, %v1209
        %v1225 = vpack.c.b16 %v1212, %v1211
        %v1226 = vpack.c.b16 %v1214, %v1213
        %v1227 = vpack.c.b16 %v1216, %v1215
        %v1228 = vpack.c.b16 %v1218, %v1217
        %v1229 = vpack.c.b16 %v1220, %v1219
        %v1230 = vpack.c.b16 %v1222, %v1221
        %v1239 = vadd.bf16 %v983, %v1223
        %v1240 = vadd.bf16 %v984, %v1223
        %v1241 = vadd.bf16 %v985, %v1224
        %v1242 = vadd.bf16 %v986, %v1224
        %v1243 = vadd.bf16 %v987, %v1225
        %v1244 = vadd.bf16 %v988, %v1225
        %v1245 = vadd.bf16 %v989, %v1226
        %v1246 = vadd.bf16 %v990, %v1226
        %v1247 = vadd.bf16 %v991, %v1227
        %v1248 = vadd.bf16 %v992, %v1227
        %v1249 = vadd.bf16 %v993, %v1228
        %v1250 = vadd.bf16 %v994, %v1228
        %v1251 = vadd.bf16 %v995, %v1229
        %v1252 = vadd.bf16 %v996, %v1229
        %v1253 = vadd.bf16 %v997, %v1230
        %v1254 = vadd.bf16 %v998, %v1230
        %v1255 = vtanh.bf16.pop %v1239
        %v1256 = vtanh.bf16.pop %v1240
        %v1257 = vtanh.bf16.pop %v1241
        %v1258 = vtanh.bf16.pop %v1242
        %v1259 = vtanh.bf16.pop %v1243
        %v1260 = vtanh.bf16.pop %v1244
        %v1261 = vtanh.bf16.pop %v1245
        %v1262 = vtanh.bf16.pop %v1246
        %v1263 = vtanh.bf16.pop %v1247
        %v1264 = vtanh.bf16.pop %v1248
        %v1265 = vtanh.bf16.pop %v1249
        %v1266 = vtanh.bf16.pop %v1250
        %v1267 = vtanh.bf16.pop %v1251
        %v1268 = vtanh.bf16.pop %v1252
        %v1269 = vtanh.bf16.pop %v1253
        %v1270 = vtanh.bf16.pop %v1254
        %v1271 = vld [vmem:[%s3] sm:$0xf]
        %v1272 = vld [vmem:[%s3 + $0x4] sm:$0xf]
        %v1273 = vld [vmem:[%s3 + $0x8] sm:$0xf]
        %v1274 = vld [vmem:[%s3 + $0xc] sm:$0xf]
        %v1275 = vld [vmem:[%s3 + $0x10] sm:$0xf]
        %v1276 = vld [vmem:[%s3 + $0x14] sm:$0xf]
        %v1277 = vld [vmem:[%s3 + $0x18] sm:$0xf]
        %v1278 = vld [vmem:[%s3 + $0x1c] sm:$0xf]
        %v1279 = vld [vmem:[%s3 + $0x20] sm:$0xf]
        %v1280 = vld [vmem:[%s3 + $0x24] sm:$0xf]
        %v1281 = vld [vmem:[%s3 + $0x28] sm:$0xf]
        %v1282 = vld [vmem:[%s3 + $0x2c] sm:$0xf]
        %v1283 = vld [vmem:[%s3 + $0x30] sm:$0xf]
        %v1284 = vld [vmem:[%s3 + $0x34] sm:$0xf]
        %v1285 = vld [vmem:[%s3 + $0x38] sm:$0xf]
        %v1286 = vld [vmem:[%s3 + $0x3c] sm:$0xf]
        %v1287 = vld [vmem:[%s4] sm:$0xf]
        %v1288 = vld [vmem:[%s4 + $0x4] sm:$0xf]
        %v1289 = vld [vmem:[%s4 + $0x8] sm:$0xf]
        %v1290 = vld [vmem:[%s4 + $0xc] sm:$0xf]
        %v1291 = vld [vmem:[%s4 + $0x10] sm:$0xf]
        %v1292 = vld [vmem:[%s4 + $0x14] sm:$0xf]
        %v1293 = vld [vmem:[%s4 + $0x18] sm:$0xf]
        %v1294 = vld [vmem:[%s4 + $0x1c] sm:$0xf]
        %v1295 = vld [vmem:[%s4 + $0x20] sm:$0xf]
        %v1296 = vld [vmem:[%s4 + $0x24] sm:$0xf]
        %v1297 = vld [vmem:[%s4 + $0x28] sm:$0xf]
        %v1298 = vld [vmem:[%s4 + $0x2c] sm:$0xf]
        %v1299 = vld [vmem:[%s4 + $0x30] sm:$0xf]
        %v1300 = vld [vmem:[%s4 + $0x34] sm:$0xf]
        %v1301 = vld [vmem:[%s4 + $0x38] sm:$0xf]
        %v1302 = vld [vmem:[%s4 + $0x3c] sm:$0xf]
        %v1319 = vunpack.c.l.b16 %v1271
        %v1320 = vunpack.c.l.b16 %v1272
        %v1321 = vunpack.c.l.b16 %v1273
        %v1322 = vunpack.c.l.b16 %v1274
        %v1323 = vunpack.c.l.b16 %v1275
        %v1324 = vunpack.c.l.b16 %v1276
        %v1325 = vunpack.c.l.b16 %v1277
        %v1326 = vunpack.c.l.b16 %v1278
        %v1327 = vunpack.c.l.b16 %v1279
        %v1328 = vunpack.c.l.b16 %v1280
        %v1329 = vunpack.c.l.b16 %v1281
        %v1330 = vunpack.c.l.b16 %v1282
        %v1331 = vunpack.c.l.b16 %v1283
        %v1332 = vunpack.c.l.b16 %v1284
        %v1333 = vunpack.c.l.b16 %v1285
        %v1334 = vunpack.c.l.b16 %v1286
        %v1335 = vpack.c.b16 %v1320, %v1319
        %v1336 = vpack.c.b16 %v1322, %v1321
        %v1337 = vpack.c.b16 %v1324, %v1323
        %v1338 = vpack.c.b16 %v1326, %v1325
        %v1339 = vpack.c.b16 %v1328, %v1327
        %v1340 = vpack.c.b16 %v1330, %v1329
        %v1341 = vpack.c.b16 %v1332, %v1331
        %v1342 = vpack.c.b16 %v1334, %v1333
        %1351 = vmatprep.subr.bf16.mxu0 %v1256
        %1352 = vmatpush1.bf16.msra.mxu0 %v1255
        %1353 = vmatprep.subr.bf16.mxu0 %v1258
        %1354 = vmatpush1.bf16.msra.mxu0 %v1257
        %1355 = vmatprep.subr.bf16.mxu0 %v1260
        %1356 = vmatpush1.bf16.msra.mxu0 %v1259
        %1357 = vmatprep.subr.bf16.mxu0 %v1262
        %1358 = vmatpush1.bf16.msra.mxu0 %v1261
        %1359 = vmatprep.subr.bf16.mxu0 %v1264
        %1360 = vmatpush1.bf16.msra.mxu0 %v1263
        %1361 = vmatprep.subr.bf16.mxu0 %v1266
        %1362 = vmatpush1.bf16.msra.mxu0 %v1265
        %1363 = vmatprep.subr.bf16.mxu0 %v1268
        %1364 = vmatpush1.bf16.msra.mxu0 %v1267
        %1365 = vmatprep.subr.bf16.mxu0 %v1270
        %1366 = vmatpush1.bf16.msra.mxu0 %v1269
        %1367 = vmatprep.subr.bf16.mxu0 0
        %1368 = vmatpush1.bf16.msra.mxu0 0
        %1369 = vmatprep.subr.bf16.mxu0 0
        %1370 = vmatpush1.bf16.msra.mxu0 0
        %1371 = vmatprep.subr.bf16.mxu0 0
        %1372 = vmatpush1.bf16.msra.mxu0 0
        %1373 = vmatprep.subr.bf16.mxu0 0
        %1374 = vmatpush1.bf16.msra.mxu0 0
        %1375 = vmatprep.subr.bf16.mxu0 0
        %1376 = vmatpush1.bf16.msra.mxu0 0
        %1377 = vmatprep.subr.bf16.mxu0 0
        %1378 = vmatpush1.bf16.msra.mxu0 0
        %1379 = vmatprep.subr.bf16.mxu0 0
        %1380 = vmatpush1.bf16.msra.mxu0 0
        %1381 = vmatprep.subr.bf16.mxu0 0
        %1382 = vmatpush1.bf16.msra.mxu0 0
        %1383 = vmatprep.mubr.bf16.mxu0 0
        %1384 = vmatmul.mubr.bf16.gmra.mrb[0].mxu0 %v1335
        %v1385 = vpop.f32.mrb[0].mxu0
        %v1386 = vadd.f32 0.0, %v1385
        %v1387 = vpop.f32.mrb[0].mxu0
        %v1388 = vadd.f32 0.0, %v1387
        %v1389 = vpop.f32.mrb[0].mxu0
        %v1390 = vadd.f32 0.0, %v1389
        %v1391 = vpop.f32.mrb[0].mxu0
        %v1392 = vadd.f32 0.0, %v1391
        %1393 = vmatprep.mubr.bf16.mxu0 0
        %1394 = vmatmul.mubr.bf16.gmra.mrb[0].mxu0 %v1336
        %v1395 = vpop.f32.mrb[0].mxu0
        %v1396 = vadd.f32 0.0, %v1395
        %v1397 = vpop.f32.mrb[0].mxu0
        %v1398 = vadd.f32 0.0, %v1397
        %v1399 = vpop.f32.mrb[0].mxu0
        %v1400 = vadd.f32 0.0, %v1399
        %v1401 = vpop.f32.mrb[0].mxu0
        %v1402 = vadd.f32 0.0, %v1401
        %1403 = vmatprep.mubr.bf16.mxu0 0
        %1404 = vmatmul.mubr.bf16.gmra.mrb[0].mxu0 %v1337
        %v1405 = vpop.f32.mrb[0].mxu0
        %v1406 = vadd.f32 0.0, %v1405
        %v1407 = vpop.f32.mrb[0].mxu0
        %v1408 = vadd.f32 0.0, %v1407
        %v1409 = vpop.f32.mrb[0].mxu0
        %v1410 = vadd.f32 0.0, %v1409
        %v1411 = vpop.f32.mrb[0].mxu0
        %v1412 = vadd.f32 0.0, %v1411
        %1413 = vmatprep.mubr.bf16.mxu0 0
        %1414 = vmatmul.mubr.bf16.gmra.mrb[0].mxu0 %v1338
        %v1415 = vpop.f32.mrb[0].mxu0
        %v1416 = vadd.f32 0.0, %v1415
        %v1417 = vpop.f32.mrb[0].mxu0
        %v1418 = vadd.f32 0.0, %v1417
        %v1419 = vpop.f32.mrb[0].mxu0
        %v1420 = vadd.f32 0.0, %v1419
        %v1421 = vpop.f32.mrb[0].mxu0
        %v1422 = vadd.f32 0.0, %v1421
        %1423 = vmatprep.mubr.bf16.mxu0 0
        %1424 = vmatmul.mubr.bf16.gmra.mrb[0].mxu0 %v1339
        %v1425 = vpop.f32.mrb[0].mxu0
        %v1426 = vadd.f32 0.0, %v1425
        %v1427 = vpop.f32.mrb[0].mxu0
        %v1428 = vadd.f32 0.0, %v1427
        %v1429 = vpop.f32.mrb[0].mxu0
        %v1430 = vadd.f32 0.0, %v1429
        %v1431 = vpop.f32.mrb[0].mxu0
        %v1432 = vadd.f32 0.0, %v1431
        %1433 = vmatprep.mubr.bf16.mxu0 0
        %1434 = vmatmul.mubr.bf16.gmra.mrb[0].mxu0 %v1340
        %v1435 = vpop.f32.mrb[0].mxu0
        %v1436 = vadd.f32 0.0, %v1435
        %v1437 = vpop.f32.mrb[0].mxu0
        %v1438 = vadd.f32 0.0, %v1437
        %v1439 = vpop.f32.mrb[0].mxu0
        %v1440 = vadd.f32 0.0, %v1439
        %v1441 = vpop.f32.mrb[0].mxu0
        %v1442 = vadd.f32 0.0, %v1441
        %1443 = vmatprep.mubr.bf16.mxu0 0
        %1444 = vmatmul.mubr.bf16.gmra.mrb[0].mxu0 %v1341
        %v1445 = vpop.f32.mrb[0].mxu0
        %v1446 = vadd.f32 0.0, %v1445
        %v1447 = vpop.f32.mrb[0].mxu0
        %v1448 = vadd.f32 0.0, %v1447
        %v1449 = vpop.f32.mrb[0].mxu0
        %v1450 = vadd.f32 0.0, %v1449
        %v1451 = vpop.f32.mrb[0].mxu0
        %v1452 = vadd.f32 0.0, %v1451
        %1453 = vmatprep.mubr.bf16.mxu0 0
        %1454 = vmatmul.mubr.bf16.gmra.mrb[0].mxu0 %v1342
        %v1455 = vpop.f32.mrb[0].mxu0
        %v1456 = vadd.f32 0.0, %v1455
        %v1457 = vpop.f32.mrb[0].mxu0
        %v1458 = vadd.f32 0.0, %v1457
        %v1459 = vpop.f32.mrb[0].mxu0
        %v1460 = vadd.f32 0.0, %v1459
        %v1461 = vpop.f32.mrb[0].mxu0
        %v1462 = vadd.f32 0.0, %v1461
        %1463 = vdwg.mxu0
        %v1464 = vpack.c.bf16 %v1390, %v1386
        %v1465 = vpack.c.bf16 %v1392, %v1388
        %v1466 = vpack.c.bf16 %v1400, %v1396
        %v1467 = vpack.c.bf16 %v1402, %v1398
        %v1468 = vpack.c.bf16 %v1410, %v1406
        %v1469 = vpack.c.bf16 %v1412, %v1408
        %v1470 = vpack.c.bf16 %v1420, %v1416
        %v1471 = vpack.c.bf16 %v1422, %v1418
        %v1472 = vpack.c.bf16 %v1430, %v1426
        %v1473 = vpack.c.bf16 %v1432, %v1428
        %v1474 = vpack.c.bf16 %v1440, %v1436
        %v1475 = vpack.c.bf16 %v1442, %v1438
        %v1476 = vpack.c.bf16 %v1450, %v1446
        %v1477 = vpack.c.bf16 %v1452, %v1448
        %v1478 = vpack.c.bf16 %v1460, %v1456
        %v1479 = vpack.c.bf16 %v1462, %v1458
        %1481 = vset.pattern.permute.xlu0 0
        %1482 = vperm.xlu0 %1481, %v1287
        %v1483 = vpop.permute.xlu0 %1482
        %v1486 = vunpack.c.l.s4 839922192
        %v1487 = vunpack.c.0.s8 %v1486
        %v1488 = vlaneseq
        %v1489 = vshrl.u32 %v1488, 7
        %v1490 = vsub.s32 %v1487, %v1489
        %v1491 = vrot.slane %v1483, %v1490
        %1493 = vset.pattern.permute.xlu0 0
        %1494 = vperm.xlu0 %1493, %v1288
        %v1495 = vpop.permute.xlu0 %1494
        %v1498 = vunpack.c.l.s4 839922192
        %v1499 = vunpack.c.0.s8 %v1498
        %v1500 = vlaneseq
        %v1501 = vshrl.u32 %v1500, 7
        %v1502 = vsub.s32 %v1499, %v1501
        %v1503 = vrot.slane %v1495, %v1502
        %1505 = vset.pattern.permute.xlu0 0
        %1506 = vperm.xlu0 %1505, %v1289
        %v1507 = vpop.permute.xlu0 %1506
        %v1510 = vunpack.c.l.s4 839922192
        %v1511 = vunpack.c.0.s8 %v1510
        %v1512 = vlaneseq
        %v1513 = vshrl.u32 %v1512, 7
        %v1514 = vsub.s32 %v1511, %v1513
        %v1515 = vrot.slane %v1507, %v1514
        %1517 = vset.pattern.permute.xlu0 0
        %1518 = vperm.xlu0 %1517, %v1290
        %v1519 = vpop.permute.xlu0 %1518
        %v1522 = vunpack.c.l.s4 839922192
        %v1523 = vunpack.c.0.s8 %v1522
        %v1524 = vlaneseq
        %v1525 = vshrl.u32 %v1524, 7
        %v1526 = vsub.s32 %v1523, %v1525
        %v1527 = vrot.slane %v1519, %v1526
        %1529 = vset.pattern.permute.xlu0 0
        %1530 = vperm.xlu0 %1529, %v1291
        %v1531 = vpop.permute.xlu0 %1530
        %v1534 = vunpack.c.l.s4 839922192
        %v1535 = vunpack.c.0.s8 %v1534
        %v1536 = vlaneseq
        %v1537 = vshrl.u32 %v1536, 7
        %v1538 = vsub.s32 %v1535, %v1537
        %v1539 = vrot.slane %v1531, %v1538
        %1541 = vset.pattern.permute.xlu0 0
        %1542 = vperm.xlu0 %1541, %v1292
        %v1543 = vpop.permute.xlu0 %1542
        %v1546 = vunpack.c.l.s4 839922192
        %v1547 = vunpack.c.0.s8 %v1546
        %v1548 = vlaneseq
        %v1549 = vshrl.u32 %v1548, 7
        %v1550 = vsub.s32 %v1547, %v1549
        %v1551 = vrot.slane %v1543, %v1550
        %1553 = vset.pattern.permute.xlu0 0
        %1554 = vperm.xlu0 %1553, %v1293
        %v1555 = vpop.permute.xlu0 %1554
        %v1558 = vunpack.c.l.s4 839922192
        %v1559 = vunpack.c.0.s8 %v1558
        %v1560 = vlaneseq
        %v1561 = vshrl.u32 %v1560, 7
        %v1562 = vsub.s32 %v1559, %v1561
        %v1563 = vrot.slane %v1555, %v1562
        %1565 = vset.pattern.permute.xlu0 0
        %1566 = vperm.xlu0 %1565, %v1294
        %v1567 = vpop.permute.xlu0 %1566
        %v1570 = vunpack.c.l.s4 839922192
        %v1571 = vunpack.c.0.s8 %v1570
        %v1572 = vlaneseq
        %v1573 = vshrl.u32 %v1572, 7
        %v1574 = vsub.s32 %v1571, %v1573
        %v1575 = vrot.slane %v1567, %v1574
        %1577 = vset.pattern.permute.xlu0 0
        %1578 = vperm.xlu0 %1577, %v1295
        %v1579 = vpop.permute.xlu0 %1578
        %v1582 = vunpack.c.l.s4 839922192
        %v1583 = vunpack.c.0.s8 %v1582
        %v1584 = vlaneseq
        %v1585 = vshrl.u32 %v1584, 7
        %v1586 = vsub.s32 %v1583, %v1585
        %v1587 = vrot.slane %v1579, %v1586
        %1589 = vset.pattern.permute.xlu0 0
        %1590 = vperm.xlu0 %1589, %v1296
        %v1591 = vpop.permute.xlu0 %1590
        %v1594 = vunpack.c.l.s4 839922192
        %v1595 = vunpack.c.0.s8 %v1594
        %v1596 = vlaneseq
        %v1597 = vshrl.u32 %v1596, 7
        %v1598 = vsub.s32 %v1595, %v1597
        %v1599 = vrot.slane %v1591, %v1598
        %1601 = vset.pattern.permute.xlu0 0
        %1602 = vperm.xlu0 %1601, %v1297
        %v1603 = vpop.permute.xlu0 %1602
        %v1606 = vunpack.c.l.s4 839922192
        %v1607 = vunpack.c.0.s8 %v1606
        %v1608 = vlaneseq
        %v1609 = vshrl.u32 %v1608, 7
        %v1610 = vsub.s32 %v1607, %v1609
        %v1611 = vrot.slane %v1603, %v1610
        %1613 = vset.pattern.permute.xlu0 0
        %1614 = vperm.xlu0 %1613, %v1298
        %v1615 = vpop.permute.xlu0 %1614
        %v1618 = vunpack.c.l.s4 839922192
        %v1619 = vunpack.c.0.s8 %v1618
        %v1620 = vlaneseq
        %v1621 = vshrl.u32 %v1620, 7
        %v1622 = vsub.s32 %v1619, %v1621
        %v1623 = vrot.slane %v1615, %v1622
        %1625 = vset.pattern.permute.xlu0 0
        %1626 = vperm.xlu0 %1625, %v1299
        %v1627 = vpop.permute.xlu0 %1626
        %v1630 = vunpack.c.l.s4 839922192
        %v1631 = vunpack.c.0.s8 %v1630
        %v1632 = vlaneseq
        %v1633 = vshrl.u32 %v1632, 7
        %v1634 = vsub.s32 %v1631, %v1633
        %v1635 = vrot.slane %v1627, %v1634
        %1637 = vset.pattern.permute.xlu0 0
        %1638 = vperm.xlu0 %1637, %v1300
        %v1639 = vpop.permute.xlu0 %1638
        %v1642 = vunpack.c.l.s4 839922192
        %v1643 = vunpack.c.0.s8 %v1642
        %v1644 = vlaneseq
        %v1645 = vshrl.u32 %v1644, 7
        %v1646 = vsub.s32 %v1643, %v1645
        %v1647 = vrot.slane %v1639, %v1646
        %1649 = vset.pattern.permute.xlu0 0
        %1650 = vperm.xlu0 %1649, %v1301
        %v1651 = vpop.permute.xlu0 %1650
        %v1654 = vunpack.c.l.s4 839922192
        %v1655 = vunpack.c.0.s8 %v1654
        %v1656 = vlaneseq
        %v1657 = vshrl.u32 %v1656, 7
        %v1658 = vsub.s32 %v1655, %v1657
        %v1659 = vrot.slane %v1651, %v1658
        %1661 = vset.pattern.permute.xlu0 0
        %1662 = vperm.xlu0 %1661, %v1302
        %v1663 = vpop.permute.xlu0 %1662
        %v1666 = vunpack.c.l.s4 839922192
        %v1667 = vunpack.c.0.s8 %v1666
        %v1668 = vlaneseq
        %v1669 = vshrl.u32 %v1668, 7
        %v1670 = vsub.s32 %v1667, %v1669
        %v1671 = vrot.slane %v1663, %v1670
        %v1688 = vunpack.c.l.b16 %v1491
        %v1689 = vunpack.c.l.b16 %v1503
        %v1690 = vunpack.c.l.b16 %v1515
        %v1691 = vunpack.c.l.b16 %v1527
        %v1692 = vunpack.c.l.b16 %v1539
        %v1693 = vunpack.c.l.b16 %v1551
        %v1694 = vunpack.c.l.b16 %v1563
        %v1695 = vunpack.c.l.b16 %v1575
        %v1696 = vunpack.c.l.b16 %v1587
        %v1697 = vunpack.c.l.b16 %v1599
        %v1698 = vunpack.c.l.b16 %v1611
        %v1699 = vunpack.c.l.b16 %v1623
        %v1700 = vunpack.c.l.b16 %v1635
        %v1701 = vunpack.c.l.b16 %v1647
        %v1702 = vunpack.c.l.b16 %v1659
        %v1703 = vunpack.c.l.b16 %v1671
        %v1704 = vpack.c.b16 %v1689, %v1688
        %v1705 = vpack.c.b16 %v1691, %v1690
        %v1706 = vpack.c.b16 %v1693, %v1692
        %v1707 = vpack.c.b16 %v1695, %v1694
        %v1708 = vpack.c.b16 %v1697, %v1696
        %v1709 = vpack.c.b16 %v1699, %v1698
        %v1710 = vpack.c.b16 %v1701, %v1700
        %v1711 = vpack.c.b16 %v1703, %v1702
        %v1720 = vadd.bf16 %v1464, %v1704
        %v1721 = vadd.bf16 %v1465, %v1704
        %v1722 = vadd.bf16 %v1466, %v1705
        %v1723 = vadd.bf16 %v1467, %v1705
        %v1724 = vadd.bf16 %v1468, %v1706
        %v1725 = vadd.bf16 %v1469, %v1706
        %v1726 = vadd.bf16 %v1470, %v1707
        %v1727 = vadd.bf16 %v1471, %v1707
        %v1728 = vadd.bf16 %v1472, %v1708
        %v1729 = vadd.bf16 %v1473, %v1708
        %v1730 = vadd.bf16 %v1474, %v1709
        %v1731 = vadd.bf16 %v1475, %v1709
        %v1732 = vadd.bf16 %v1476, %v1710
        %v1733 = vadd.bf16 %v1477, %v1710
        %v1734 = vadd.bf16 %v1478, %v1711
        %v1735 = vadd.bf16 %v1479, %v1711
        %v1736 = vtanh.bf16.pop %v1720
        %v1737 = vtanh.bf16.pop %v1721
        %v1738 = vtanh.bf16.pop %v1722
        %v1739 = vtanh.bf16.pop %v1723
        %v1740 = vtanh.bf16.pop %v1724
        %v1741 = vtanh.bf16.pop %v1725
        %v1742 = vtanh.bf16.pop %v1726
        %v1743 = vtanh.bf16.pop %v1727
        %v1744 = vtanh.bf16.pop %v1728
        %v1745 = vtanh.bf16.pop %v1729
        %v1746 = vtanh.bf16.pop %v1730
        %v1747 = vtanh.bf16.pop %v1731
        %v1748 = vtanh.bf16.pop %v1732
        %v1749 = vtanh.bf16.pop %v1733
        %v1750 = vtanh.bf16.pop %v1734
        %v1751 = vtanh.bf16.pop %v1735
        %v1752 = vld [vmem:[%s5] sm:$0xf]
        %v1753 = vld [vmem:[%s5 + $0x4] sm:$0xf]
        %v1754 = vld [vmem:[%s5 + $0x8] sm:$0xf]
        %v1755 = vld [vmem:[%s5 + $0xc] sm:$0xf]
        %v1756 = vld [vmem:[%s5 + $0x10] sm:$0xf]
        %v1757 = vld [vmem:[%s5 + $0x14] sm:$0xf]
        %v1758 = vld [vmem:[%s5 + $0x18] sm:$0xf]
        %v1759 = vld [vmem:[%s5 + $0x1c] sm:$0xf]
        %v1760 = vld [vmem:[%s5 + $0x20] sm:$0xf]
        %v1761 = vld [vmem:[%s5 + $0x24] sm:$0xf]
        %v1762 = vld [vmem:[%s5 + $0x28] sm:$0xf]
        %v1763 = vld [vmem:[%s5 + $0x2c] sm:$0xf]
        %v1764 = vld [vmem:[%s5 + $0x30] sm:$0xf]
        %v1765 = vld [vmem:[%s5 + $0x34] sm:$0xf]
        %v1766 = vld [vmem:[%s5 + $0x38] sm:$0xf]
        %v1767 = vld [vmem:[%s5 + $0x3c] sm:$0xf]
        %v1768 = vld [vmem:[%s6] sm:$0xf]
        %v1769 = vld [vmem:[%s6 + $0x4] sm:$0xf]
        %v1770 = vld [vmem:[%s6 + $0x8] sm:$0xf]
        %v1771 = vld [vmem:[%s6 + $0xc] sm:$0xf]
        %v1772 = vld [vmem:[%s6 + $0x10] sm:$0xf]
        %v1773 = vld [vmem:[%s6 + $0x14] sm:$0xf]
        %v1774 = vld [vmem:[%s6 + $0x18] sm:$0xf]
        %v1775 = vld [vmem:[%s6 + $0x1c] sm:$0xf]
        %v1776 = vld [vmem:[%s6 + $0x20] sm:$0xf]
        %v1777 = vld [vmem:[%s6 + $0x24] sm:$0xf]
        %v1778 = vld [vmem:[%s6 + $0x28] sm:$0xf]
        %v1779 = vld [vmem:[%s6 + $0x2c] sm:$0xf]
        %v1780 = vld [vmem:[%s6 + $0x30] sm:$0xf]
        %v1781 = vld [vmem:[%s6 + $0x34] sm:$0xf]
        %v1782 = vld [vmem:[%s6 + $0x38] sm:$0xf]
        %v1783 = vld [vmem:[%s6 + $0x3c] sm:$0xf]
        %v1800 = vunpack.c.l.b16 %v1752
        %v1801 = vunpack.c.l.b16 %v1753
        %v1802 = vunpack.c.l.b16 %v1754
        %v1803 = vunpack.c.l.b16 %v1755
        %v1804 = vunpack.c.l.b16 %v1756
        %v1805 = vunpack.c.l.b16 %v1757
        %v1806 = vunpack.c.l.b16 %v1758
        %v1807 = vunpack.c.l.b16 %v1759
        %v1808 = vunpack.c.l.b16 %v1760
        %v1809 = vunpack.c.l.b16 %v1761
        %v1810 = vunpack.c.l.b16 %v1762
        %v1811 = vunpack.c.l.b16 %v1763
        %v1812 = vunpack.c.l.b16 %v1764
        %v1813 = vunpack.c.l.b16 %v1765
        %v1814 = vunpack.c.l.b16 %v1766
        %v1815 = vunpack.c.l.b16 %v1767
        %v1816 = vpack.c.b16 %v1801, %v1800
        %v1817 = vpack.c.b16 %v1803, %v1802
        %v1818 = vpack.c.b16 %v1805, %v1804
        %v1819 = vpack.c.b16 %v1807, %v1806
        %v1820 = vpack.c.b16 %v1809, %v1808
        %v1821 = vpack.c.b16 %v1811, %v1810
        %v1822 = vpack.c.b16 %v1813, %v1812
        %v1823 = vpack.c.b16 %v1815, %v1814
        %1832 = vmatprep.subr.bf16.mxu0 %v1737
        %1833 = vmatpush1.bf16.msra.mxu0 %v1736
        %1834 = vmatprep.subr.bf16.mxu0 %v1739
        %1835 = vmatpush1.bf16.msra.mxu0 %v1738
        %1836 = vmatprep.subr.bf16.mxu0 %v1741
        %1837 = vmatpush1.bf16.msra.mxu0 %v1740
        %1838 = vmatprep.subr.bf16.mxu0 %v1743
        %1839 = vmatpush1.bf16.msra.mxu0 %v1742
        %1840 = vmatprep.subr.bf16.mxu0 %v1745
        %1841 = vmatpush1.bf16.msra.mxu0 %v1744
        %1842 = vmatprep.subr.bf16.mxu0 %v1747
        %1843 = vmatpush1.bf16.msra.mxu0 %v1746
        %1844 = vmatprep.subr.bf16.mxu0 %v1749
        %1845 = vmatpush1.bf16.msra.mxu0 %v1748
        %1846 = vmatprep.subr.bf16.mxu0 %v1751
        %1847 = vmatpush1.bf16.msra.mxu0 %v1750
        %1848 = vmatprep.subr.bf16.mxu0 0
        %1849 = vmatpush1.bf16.msra.mxu0 0
        %1850 = vmatprep.subr.bf16.mxu0 0
        %1851 = vmatpush1.bf16.msra.mxu0 0
        %1852 = vmatprep.subr.bf16.mxu0 0
        %1853 = vmatpush1.bf16.msra.mxu0 0
        %1854 = vmatprep.subr.bf16.mxu0 0
        %1855 = vmatpush1.bf16.msra.mxu0 0
        %1856 = vmatprep.subr.bf16.mxu0 0
        %1857 = vmatpush1.bf16.msra.mxu0 0
        %1858 = vmatprep.subr.bf16.mxu0 0
        %1859 = vmatpush1.bf16.msra.mxu0 0
        %1860 = vmatprep.subr.bf16.mxu0 0
        %1861 = vmatpush1.bf16.msra.mxu0 0
        %1862 = vmatprep.subr.bf16.mxu0 0
        %1863 = vmatpush1.bf16.msra.mxu0 0
        %1864 = vmatprep.mubr.bf16.mxu0 0
        %1865 = vmatmul.mubr.bf16.gmra.mrb[0].mxu0 %v1816
        %v1866 = vpop.f32.mrb[0].mxu0
        %v1867 = vadd.f32 0.0, %v1866
        %v1868 = vpop.f32.mrb[0].mxu0
        %v1869 = vadd.f32 0.0, %v1868
        %v1870 = vpop.f32.mrb[0].mxu0
        %v1871 = vadd.f32 0.0, %v1870
        %v1872 = vpop.f32.mrb[0].mxu0
        %v1873 = vadd.f32 0.0, %v1872
        %1874 = vmatprep.mubr.bf16.mxu0 0
        %1875 = vmatmul.mubr.bf16.gmra.mrb[0].mxu0 %v1817
        %v1876 = vpop.f32.mrb[0].mxu0
        %v1877 = vadd.f32 0.0, %v1876
        %v1878 = vpop.f32.mrb[0].mxu0
        %v1879 = vadd.f32 0.0, %v1878
        %v1880 = vpop.f32.mrb[0].mxu0
        %v1881 = vadd.f32 0.0, %v1880
        %v1882 = vpop.f32.mrb[0].mxu0
        %v1883 = vadd.f32 0.0, %v1882
        %1884 = vmatprep.mubr.bf16.mxu0 0
        %1885 = vmatmul.mubr.bf16.gmra.mrb[0].mxu0 %v1818
        %v1886 = vpop.f32.mrb[0].mxu0
        %v1887 = vadd.f32 0.0, %v1886
        %v1888 = vpop.f32.mrb[0].mxu0
        %v1889 = vadd.f32 0.0, %v1888
        %v1890 = vpop.f32.mrb[0].mxu0
        %v1891 = vadd.f32 0.0, %v1890
        %v1892 = vpop.f32.mrb[0].mxu0
        %v1893 = vadd.f32 0.0, %v1892
        %1894 = vmatprep.mubr.bf16.mxu0 0
        %1895 = vmatmul.mubr.bf16.gmra.mrb[0].mxu0 %v1819
        %v1896 = vpop.f32.mrb[0].mxu0
        %v1897 = vadd.f32 0.0, %v1896
        %v1898 = vpop.f32.mrb[0].mxu0
        %v1899 = vadd.f32 0.0, %v1898
        %v1900 = vpop.f32.mrb[0].mxu0
        %v1901 = vadd.f32 0.0, %v1900
        %v1902 = vpop.f32.mrb[0].mxu0
        %v1903 = vadd.f32 0.0, %v1902
        %1904 = vmatprep.mubr.bf16.mxu0 0
        %1905 = vmatmul.mubr.bf16.gmra.mrb[0].mxu0 %v1820
        %v1906 = vpop.f32.mrb[0].mxu0
        %v1907 = vadd.f32 0.0, %v1906
        %v1908 = vpop.f32.mrb[0].mxu0
        %v1909 = vadd.f32 0.0, %v1908
        %v1910 = vpop.f32.mrb[0].mxu0
        %v1911 = vadd.f32 0.0, %v1910
        %v1912 = vpop.f32.mrb[0].mxu0
        %v1913 = vadd.f32 0.0, %v1912
        %1914 = vmatprep.mubr.bf16.mxu0 0
        %1915 = vmatmul.mubr.bf16.gmra.mrb[0].mxu0 %v1821
        %v1916 = vpop.f32.mrb[0].mxu0
        %v1917 = vadd.f32 0.0, %v1916
        %v1918 = vpop.f32.mrb[0].mxu0
        %v1919 = vadd.f32 0.0, %v1918
        %v1920 = vpop.f32.mrb[0].mxu0
        %v1921 = vadd.f32 0.0, %v1920
        %v1922 = vpop.f32.mrb[0].mxu0
        %v1923 = vadd.f32 0.0, %v1922
        %1924 = vmatprep.mubr.bf16.mxu0 0
        %1925 = vmatmul.mubr.bf16.gmra.mrb[0].mxu0 %v1822
        %v1926 = vpop.f32.mrb[0].mxu0
        %v1927 = vadd.f32 0.0, %v1926
        %v1928 = vpop.f32.mrb[0].mxu0
        %v1929 = vadd.f32 0.0, %v1928
        %v1930 = vpop.f32.mrb[0].mxu0
        %v1931 = vadd.f32 0.0, %v1930
        %v1932 = vpop.f32.mrb[0].mxu0
        %v1933 = vadd.f32 0.0, %v1932
        %1934 = vmatprep.mubr.bf16.mxu0 0
        %1935 = vmatmul.mubr.bf16.gmra.mrb[0].mxu0 %v1823
        %v1936 = vpop.f32.mrb[0].mxu0
        %v1937 = vadd.f32 0.0, %v1936
        %v1938 = vpop.f32.mrb[0].mxu0
        %v1939 = vadd.f32 0.0, %v1938
        %v1940 = vpop.f32.mrb[0].mxu0
        %v1941 = vadd.f32 0.0, %v1940
        %v1942 = vpop.f32.mrb[0].mxu0
        %v1943 = vadd.f32 0.0, %v1942
        %1944 = vdwg.mxu0
        %v1945 = vpack.c.bf16 %v1871, %v1867
        %v1946 = vpack.c.bf16 %v1873, %v1869
        %v1947 = vpack.c.bf16 %v1881, %v1877
        %v1948 = vpack.c.bf16 %v1883, %v1879
        %v1949 = vpack.c.bf16 %v1891, %v1887
        %v1950 = vpack.c.bf16 %v1893, %v1889
        %v1951 = vpack.c.bf16 %v1901, %v1897
        %v1952 = vpack.c.bf16 %v1903, %v1899
        %v1953 = vpack.c.bf16 %v1911, %v1907
        %v1954 = vpack.c.bf16 %v1913, %v1909
        %v1955 = vpack.c.bf16 %v1921, %v1917
        %v1956 = vpack.c.bf16 %v1923, %v1919
        %v1957 = vpack.c.bf16 %v1931, %v1927
        %v1958 = vpack.c.bf16 %v1933, %v1929
        %v1959 = vpack.c.bf16 %v1941, %v1937
        %v1960 = vpack.c.bf16 %v1943, %v1939
        %1962 = vset.pattern.permute.xlu0 0
        %1963 = vperm.xlu0 %1962, %v1768
        %v1964 = vpop.permute.xlu0 %1963
        %v1967 = vunpack.c.l.s4 839922192
        %v1968 = vunpack.c.0.s8 %v1967
        %v1969 = vlaneseq
        %v1970 = vshrl.u32 %v1969, 7
        %v1971 = vsub.s32 %v1968, %v1970
        %v1972 = vrot.slane %v1964, %v1971
        %1974 = vset.pattern.permute.xlu0 0
        %1975 = vperm.xlu0 %1974, %v1769
        %v1976 = vpop.permute.xlu0 %1975
        %v1979 = vunpack.c.l.s4 839922192
        %v1980 = vunpack.c.0.s8 %v1979
        %v1981 = vlaneseq
        %v1982 = vshrl.u32 %v1981, 7
        %v1983 = vsub.s32 %v1980, %v1982
        %v1984 = vrot.slane %v1976, %v1983
        %1986 = vset.pattern.permute.xlu0 0
        %1987 = vperm.xlu0 %1986, %v1770
        %v1988 = vpop.permute.xlu0 %1987
        %v1991 = vunpack.c.l.s4 839922192
        %v1992 = vunpack.c.0.s8 %v1991
        %v1993 = vlaneseq
        %v1994 = vshrl.u32 %v1993, 7
        %v1995 = vsub.s32 %v1992, %v1994
        %v1996 = vrot.slane %v1988, %v1995
        %1998 = vset.pattern.permute.xlu0 0
        %1999 = vperm.xlu0 %1998, %v1771
        %v2000 = vpop.permute.xlu0 %1999
        %v2003 = vunpack.c.l.s4 839922192
        %v2004 = vunpack.c.0.s8 %v2003
        %v2005 = vlaneseq
        %v2006 = vshrl.u32 %v2005, 7
        %v2007 = vsub.s32 %v2004, %v2006
        %v2008 = vrot.slane %v2000, %v2007
        %2010 = vset.pattern.permute.xlu0 0
        %2011 = vperm.xlu0 %2010, %v1772
        %v2012 = vpop.permute.xlu0 %2011
        %v2015 = vunpack.c.l.s4 839922192
        %v2016 = vunpack.c.0.s8 %v2015
        %v2017 = vlaneseq
        %v2018 = vshrl.u32 %v2017, 7
        %v2019 = vsub.s32 %v2016, %v2018
        %v2020 = vrot.slane %v2012, %v2019
        %2022 = vset.pattern.permute.xlu0 0
        %2023 = vperm.xlu0 %2022, %v1773
        %v2024 = vpop.permute.xlu0 %2023
        %v2027 = vunpack.c.l.s4 839922192
        %v2028 = vunpack.c.0.s8 %v2027
        %v2029 = vlaneseq
        %v2030 = vshrl.u32 %v2029, 7
        %v2031 = vsub.s32 %v2028, %v2030
        %v2032 = vrot.slane %v2024, %v2031
        %2034 = vset.pattern.permute.xlu0 0
        %2035 = vperm.xlu0 %2034, %v1774
        %v2036 = vpop.permute.xlu0 %2035
        %v2039 = vunpack.c.l.s4 839922192
        %v2040 = vunpack.c.0.s8 %v2039
        %v2041 = vlaneseq
        %v2042 = vshrl.u32 %v2041, 7
        %v2043 = vsub.s32 %v2040, %v2042
        %v2044 = vrot.slane %v2036, %v2043
        %2046 = vset.pattern.permute.xlu0 0
        %2047 = vperm.xlu0 %2046, %v1775
        %v2048 = vpop.permute.xlu0 %2047
        %v2051 = vunpack.c.l.s4 839922192
        %v2052 = vunpack.c.0.s8 %v2051
        %v2053 = vlaneseq
        %v2054 = vshrl.u32 %v2053, 7
        %v2055 = vsub.s32 %v2052, %v2054
        %v2056 = vrot.slane %v2048, %v2055
        %2058 = vset.pattern.permute.xlu0 0
        %2059 = vperm.xlu0 %2058, %v1776
        %v2060 = vpop.permute.xlu0 %2059
        %v2063 = vunpack.c.l.s4 839922192
        %v2064 = vunpack.c.0.s8 %v2063
        %v2065 = vlaneseq
        %v2066 = vshrl.u32 %v2065, 7
        %v2067 = vsub.s32 %v2064, %v2066
        %v2068 = vrot.slane %v2060, %v2067
        %2070 = vset.pattern.permute.xlu0 0
        %2071 = vperm.xlu0 %2070, %v1777
        %v2072 = vpop.permute.xlu0 %2071
        %v2075 = vunpack.c.l.s4 839922192
        %v2076 = vunpack.c.0.s8 %v2075
        %v2077 = vlaneseq
        %v2078 = vshrl.u32 %v2077, 7
        %v2079 = vsub.s32 %v2076, %v2078
        %v2080 = vrot.slane %v2072, %v2079
        %2082 = vset.pattern.permute.xlu0 0
        %2083 = vperm.xlu0 %2082, %v1778
        %v2084 = vpop.permute.xlu0 %2083
        %v2087 = vunpack.c.l.s4 839922192
        %v2088 = vunpack.c.0.s8 %v2087
        %v2089 = vlaneseq
        %v2090 = vshrl.u32 %v2089, 7
        %v2091 = vsub.s32 %v2088, %v2090
        %v2092 = vrot.slane %v2084, %v2091
        %2094 = vset.pattern.permute.xlu0 0
        %2095 = vperm.xlu0 %2094, %v1779
        %v2096 = vpop.permute.xlu0 %2095
        %v2099 = vunpack.c.l.s4 839922192
        %v2100 = vunpack.c.0.s8 %v2099
        %v2101 = vlaneseq
        %v2102 = vshrl.u32 %v2101, 7
        %v2103 = vsub.s32 %v2100, %v2102
        %v2104 = vrot.slane %v2096, %v2103
        %2106 = vset.pattern.permute.xlu0 0
        %2107 = vperm.xlu0 %2106, %v1780
        %v2108 = vpop.permute.xlu0 %2107
        %v2111 = vunpack.c.l.s4 839922192
        %v2112 = vunpack.c.0.s8 %v2111
        %v2113 = vlaneseq
        %v2114 = vshrl.u32 %v2113, 7
        %v2115 = vsub.s32 %v2112, %v2114
        %v2116 = vrot.slane %v2108, %v2115
        %2118 = vset.pattern.permute.xlu0 0
        %2119 = vperm.xlu0 %2118, %v1781
        %v2120 = vpop.permute.xlu0 %2119
        %v2123 = vunpack.c.l.s4 839922192
        %v2124 = vunpack.c.0.s8 %v2123
        %v2125 = vlaneseq
        %v2126 = vshrl.u32 %v2125, 7
        %v2127 = vsub.s32 %v2124, %v2126
        %v2128 = vrot.slane %v2120, %v2127
        %2130 = vset.pattern.permute.xlu0 0
        %2131 = vperm.xlu0 %2130, %v1782
        %v2132 = vpop.permute.xlu0 %2131
        %v2135 = vunpack.c.l.s4 839922192
        %v2136 = vunpack.c.0.s8 %v2135
        %v2137 = vlaneseq
        %v2138 = vshrl.u32 %v2137, 7
        %v2139 = vsub.s32 %v2136, %v2138
        %v2140 = vrot.slane %v2132, %v2139
        %2142 = vset.pattern.permute.xlu0 0
        %2143 = vperm.xlu0 %2142, %v1783
        %v2144 = vpop.permute.xlu0 %2143
        %v2147 = vunpack.c.l.s4 839922192
        %v2148 = vunpack.c.0.s8 %v2147
        %v2149 = vlaneseq
        %v2150 = vshrl.u32 %v2149, 7
        %v2151 = vsub.s32 %v2148, %v2150
        %v2152 = vrot.slane %v2144, %v2151
        %v2169 = vunpack.c.l.b16 %v1972
        %v2170 = vunpack.c.l.b16 %v1984
        %v2171 = vunpack.c.l.b16 %v1996
        %v2172 = vunpack.c.l.b16 %v2008
        %v2173 = vunpack.c.l.b16 %v2020
        %v2174 = vunpack.c.l.b16 %v2032
        %v2175 = vunpack.c.l.b16 %v2044
        %v2176 = vunpack.c.l.b16 %v2056
        %v2177 = vunpack.c.l.b16 %v2068
        %v2178 = vunpack.c.l.b16 %v2080
        %v2179 = vunpack.c.l.b16 %v2092
        %v2180 = vunpack.c.l.b16 %v2104
        %v2181 = vunpack.c.l.b16 %v2116
        %v2182 = vunpack.c.l.b16 %v2128
        %v2183 = vunpack.c.l.b16 %v2140
        %v2184 = vunpack.c.l.b16 %v2152
        %v2185 = vpack.c.b16 %v2170, %v2169
        %v2186 = vpack.c.b16 %v2172, %v2171
        %v2187 = vpack.c.b16 %v2174, %v2173
        %v2188 = vpack.c.b16 %v2176, %v2175
        %v2189 = vpack.c.b16 %v2178, %v2177
        %v2190 = vpack.c.b16 %v2180, %v2179
        %v2191 = vpack.c.b16 %v2182, %v2181
        %v2192 = vpack.c.b16 %v2184, %v2183
        %v2201 = vadd.bf16 %v1945, %v2185
        %v2202 = vadd.bf16 %v1946, %v2185
        %v2203 = vadd.bf16 %v1947, %v2186
        %v2204 = vadd.bf16 %v1948, %v2186
        %v2205 = vadd.bf16 %v1949, %v2187
        %v2206 = vadd.bf16 %v1950, %v2187
        %v2207 = vadd.bf16 %v1951, %v2188
        %v2208 = vadd.bf16 %v1952, %v2188
        %v2209 = vadd.bf16 %v1953, %v2189
        %v2210 = vadd.bf16 %v1954, %v2189
        %v2211 = vadd.bf16 %v1955, %v2190
        %v2212 = vadd.bf16 %v1956, %v2190
        %v2213 = vadd.bf16 %v1957, %v2191
        %v2214 = vadd.bf16 %v1958, %v2191
        %v2215 = vadd.bf16 %v1959, %v2192
        %v2216 = vadd.bf16 %v1960, %v2192
        %v2217 = vtanh.bf16.pop %v2201
        %v2218 = vtanh.bf16.pop %v2202
        %v2219 = vtanh.bf16.pop %v2203
        %v2220 = vtanh.bf16.pop %v2204
        %v2221 = vtanh.bf16.pop %v2205
        %v2222 = vtanh.bf16.pop %v2206
        %v2223 = vtanh.bf16.pop %v2207
        %v2224 = vtanh.bf16.pop %v2208
        %v2225 = vtanh.bf16.pop %v2209
        %v2226 = vtanh.bf16.pop %v2210
        %v2227 = vtanh.bf16.pop %v2211
        %v2228 = vtanh.bf16.pop %v2212
        %v2229 = vtanh.bf16.pop %v2213
        %v2230 = vtanh.bf16.pop %v2214
        %v2231 = vtanh.bf16.pop %v2215
        %v2232 = vtanh.bf16.pop %v2216
        %v2233 = vld [vmem:[%s7] sm:$0x1]
        %v2234 = vld [vmem:[#allocation2] sm:$0x1]
        %2236 = vset.pattern.permute.xlu0 0
        %2237 = vperm.xlu0 %2236, %v2234
        %v2238 = vpop.permute.xlu0 %2237
        %v2240 = vlaneseq
        %v2241 = vshrl.u32 %v2240, 7
        %v2242 = vsub.s32 0, %v2241
        %v2243 = vrot.slane %v2238, %v2242
        %2244 = vmatprep.subr.bf16.mxu0 %v2218
        %2245 = vmatpush1.bf16.msra.mxu0 %v2217
        %2246 = vmatprep.subr.bf16.mxu0 %v2220
        %2247 = vmatpush1.bf16.msra.mxu0 %v2219
        %2248 = vmatprep.subr.bf16.mxu0 %v2222
        %2249 = vmatpush1.bf16.msra.mxu0 %v2221
        %2250 = vmatprep.subr.bf16.mxu0 %v2224
        %2251 = vmatpush1.bf16.msra.mxu0 %v2223
        %2252 = vmatprep.subr.bf16.mxu0 %v2226
        %2253 = vmatpush1.bf16.msra.mxu0 %v2225
        %2254 = vmatprep.subr.bf16.mxu0 %v2228
        %2255 = vmatpush1.bf16.msra.mxu0 %v2227
        %2256 = vmatprep.subr.bf16.mxu0 %v2230
        %2257 = vmatpush1.bf16.msra.mxu0 %v2229
        %2258 = vmatprep.subr.bf16.mxu0 %v2232
        %2259 = vmatpush1.bf16.msra.mxu0 %v2231
        %2260 = vmatprep.subr.bf16.mxu0 0
        %2261 = vmatpush1.bf16.msra.mxu0 0
        %2262 = vmatprep.subr.bf16.mxu0 0
        %2263 = vmatpush1.bf16.msra.mxu0 0
        %2264 = vmatprep.subr.bf16.mxu0 0
        %2265 = vmatpush1.bf16.msra.mxu0 0
        %2266 = vmatprep.subr.bf16.mxu0 0
        %2267 = vmatpush1.bf16.msra.mxu0 0
        %2268 = vmatprep.subr.bf16.mxu0 0
        %2269 = vmatpush1.bf16.msra.mxu0 0
        %2270 = vmatprep.subr.bf16.mxu0 0
        %2271 = vmatpush1.bf16.msra.mxu0 0
        %2272 = vmatprep.subr.bf16.mxu0 0
        %2273 = vmatpush1.bf16.msra.mxu0 0
        %2274 = vmatprep.subr.bf16.mxu0 0
        %2275 = vmatpush1.bf16.msra.mxu0 0
        %2276 = vmatprep.mubr.bf16.mxu0 0
        %2277 = vmatmul.mubr.bf16.gmra.mrb[0].mxu0 %v2233
        %v2278 = vpop.f32.mrb[0].mxu0
        %v2279 = vadd.f32 %v2243, %v2278
        %v2280 = vpop.f32.mrb[0].mxu0
        %v2281 = vadd.f32 %v2243, %v2280
        %v2282 = vpop.f32.mrb[0].mxu0
        %v2283 = vpop.f32.mrb[0].mxu0
        %2284 = vdwg.mxu0
        %v2287 = vcombine.low %v2279, %v2281
        %v2289 = vunpack.c.l.s4 1966171168
        %v2290 = vunpack.c.0.s8 %v2289
        %v2291 = vlaneseq
        %v2292 = vshrl.u32 %v2291, 7
        %v2293 = vsub.s32 %v2290, %v2292
        %v2294 = vrot.slane %v2287, %v2293
        %v2296 = vunpack.c.l.s4 1966171168
        %v2297 = vunpack.c.0.s8 %v2296
        %v2298 = vlaneseq
        %v2299 = vshrl.u32 %v2298, 7
        %v2300 = vsub.s32 %v2297, %v2299
        %v2301 = vrot.slane %v2294, %v2300
        %v2303 = vlaneseq
        %vm2304 = vcmp.ge.s32.totalorder %v2303, 0
        %vm2305 = vcmp.lt.s32.totalorder %v2303, 256
        %vm2306 = vmand %vm2304, %vm2305
        %2307 = vst.msk [vmem:[%s749] sm:$0x3] %vm2306, %v2301
        %s2308 = sand.u32 %s227, 1
        %s2309 = scalar_lea.sflag [#allocation5], %s2308
        %s2310 = sand.u32 %s227, 1
        %s2311 = smul.addr %s2310, 2
        %s2312 = scalar_lea.vmem [#allocation4], %s2311
        // Predicated region
        $region123: #{tpu_custom_call.1} parent=117 // pred_check
          %p2313 = pneg %p237
        $region124: #{tpu_custom_call.1} parent=117 // pred_check_branch
          %2315 = sbr.rel (%p2313) target = $region126
        $region125: #{tpu_custom_call.1} parent=117 // pred_region
          %s2316 = smul.u32 2, %s25
          %s2317 = ssub.s32 3, %s2316
          %p2318 = scmp.lt.s32.totalorder %s2317, 2
          %s2319 = scalar_select %p2318, %s2317, 2
          %s2320 = smul.u32 16, %s2319
          %s2322 = ssub.s32 32, %s2320
          %2323 = vsyncadd %s2309, %s2322
          %p2324 = scmp.ne.s32.totalorder 0, %s2320
          %s2325 = smul.addr %s2316, 16
          %s2326 = scalar_lea.hbm %s9, %s2325
          %s2327 = sshll.u32 %s2319, 4
          %s2328 = sshll.u32 %s2312, 4
          %s2329 = int_to_ptr.vmem [resolvable:$true] %s2328
          %2331 = dma.vmem_to_hbm [thread:$0]  (%p2324), %s2329, %s2327, %s2326, %s2309
        $region126: #{tpu_custom_call.1} parent=117 // pred_fallthru
          _
      $region118: #{tpu_custom_call.1} parent=5 // pred_fallthru
        _
      %p2332 = scmp.le.s32.totalorder 2, %s20
      // Predicated region
      $region127: #{tpu_custom_call.1} parent=5 // pred_check
        %p2333 = pneg %p2332
      $region128: #{tpu_custom_call.1} parent=5 // pred_check_branch
        %2335 = sbr.rel (%p2333) target = $region130
      $region129: #{tpu_custom_call.1} parent=5 // pred_region
        %s2336 = ssub.s32 %s20, 2
        // Predicated region
        $region131: #{tpu_custom_call.1} parent=129 // pred_check
          %p2337 = pneg %p243
        $region132: #{tpu_custom_call.1} parent=129 // pred_check_branch
          %2339 = sbr.rel (%p2337) target = $region134
        $region133: #{tpu_custom_call.1} parent=129 // pred_region
          %s2340 = sand.u32 %s228, 1
          %s2341 = scalar_lea.sflag [#allocation5], %s2340
          %s2342 = sand.u32 %s228, 1
          %s2343 = smul.addr %s2342, 2
          %s2344 = scalar_lea.vmem [#allocation4], %s2343
          %2345 = dma.done %s2341, 32
        $region134: #{tpu_custom_call.1} parent=129 // pred_fallthru
          _
      $region130: #{tpu_custom_call.1} parent=5 // pred_fallthru
        _
    $region6: #{tpu_custom_call.1} parent=1 // loop_footer
      %s24 = sadd.s32 1, %s20
    $region7: #{tpu_custom_call.1} parent=1 // loop_footer_branch
      %19 = sbr.rel target = $region3
    $region8: #{tpu_custom_call.1} parent=1 // loop_exit
      _
    %2346 = vsyncpa [#allocation5], 1
    %s2347 = scalar_lea.sflag [#allocation5], 1
    %2348 = vsyncpa %s2347, 1

</llo_original>
